<compile_context>
chip_gen: v5e
topology: v5e:2x2
jax: 0.10.0
libtpu: 0.0.40
codegen_flags: <defaults>
</compile_context>

<pallas_src>
import jax
import jax.numpy as jnp
from jax.experimental import pallas as pl
from jax.experimental.pallas import tpu as pltpu

IN_DIM = 28 * 28   # 784
H1 = 128
H2 = 64
LATENT = 10


def _elu(x):
    # ELU with alpha=1.0 (PyTorch default): x if x > 0 else exp(x) - 1.
    # min() keeps the untaken exp branch from overflowing for large positive x.
    return jnp.where(x > 0, x, jnp.exp(jnp.minimum(x, 0.0)) - 1.0)


def vae_kernel(
    x_ref, eps_ref,
    w1_ref, b1_ref, w2_ref, b2_ref,
    wmlv_ref, bmlv_ref,
    wd1_ref, bd1_ref, wd2_ref, bd2_ref, wd3_ref, bd3_ref,
    xhat_ref, mu_ref, lv_ref,
):
    cdt = w1_ref.dtype            # matmul-input dtype (bf16 on the fast path)

    x = x_ref[...].astype(cdt)    # [bB, 784]
    eps = eps_ref[...]            # [bB, 10]  (f32)

    # ---- encoder ----
    h = jnp.dot(x, w1_ref[...], preferred_element_type=jnp.float32) + b1_ref[...]
    h = _elu(h)                                                    # [bB, 128] f32
    h = jnp.dot(h.astype(cdt), w2_ref[...],
                preferred_element_type=jnp.float32) + b2_ref[...]
    h = _elu(h)                                                    # [bB, 64] f32

    # ---- fused latent heads: [mu | log_var] in one MXU pass ----
    mulv = jnp.dot(h.astype(cdt), wmlv_ref[...],
                   preferred_element_type=jnp.float32) + bmlv_ref[...]   # [bB, 20]
    mu = mulv[:, :LATENT]
    log_var = mulv[:, LATENT:]

    # ---- reparameterization: z = mu + exp(log_var/2) * eps ----
    z = mu + jnp.exp(log_var * 0.5) * eps                          # [bB, 10]

    # ---- decoder ----
    d = jnp.dot(z.astype(cdt), wd1_ref[...],
                preferred_element_type=jnp.float32) + bd1_ref[...]
    d = _elu(d)                                                    # [bB, 64]
    d = jnp.dot(d.astype(cdt), wd2_ref[...],
                preferred_element_type=jnp.float32) + bd2_ref[...]
    d = _elu(d)                                                    # [bB, 128]
    d = jnp.dot(d.astype(cdt), wd3_ref[...],
                preferred_element_type=jnp.float32) + bd3_ref[...]

    xhat_ref[...] = jax.nn.sigmoid(d).astype(xhat_ref.dtype)       # [bB, 784]
    mu_ref[...] = mu.astype(mu_ref.dtype)                          # [bB, 10]
    lv_ref[...] = log_var.astype(lv_ref.dtype)                     # [bB, 10]


def vae_forward(x, eps, params, *, block_b=None, use_bf16=True):
    """x: [B, 784] f32, eps: [B, 10] f32 -> (x_hat [B,784], mu [B,10], log_var [B,10])."""
    B = x.shape[0]
    assert x.shape == (B, IN_DIM) and eps.shape == (B, LATENT)

    # Pick a batch tile: multiples of 128 fill the MXU M dimension; small or
    # odd B falls back to a single whole-batch block (grid of 1).
    if block_b is None:
        block_b = B
        for cand in (512, 256, 128):
            if B % cand == 0:
                block_b = cand
                break
    assert B % block_b == 0
    grid = (B // block_b,)

    mat_dtype = jnp.bfloat16 if use_bf16 else jnp.float32

    # Fuse mu / log_var heads: [64, 20] weight, [1, 20] bias (one MXU pass).
    wmlv = jnp.concatenate([params["wmu"], params["wlv"]], axis=1)
    bmlv = jnp.concatenate([params["bmu"], params["blv"]], axis=1)

    weights = [params["w1"], params["w2"], wmlv,
               params["wd1"], params["wd2"], params["wd3"]]
    biases = [params["b1"], params["b2"], bmlv,
              params["bd1"], params["bd2"], params["bd3"]]
    weights = [w.astype(mat_dtype) for w in weights]   # MXU inputs (bf16 fast path)
    biases = [b.astype(jnp.float32) for b in biases]   # f32 epilogue

    def batch_spec(n):
        return pl.BlockSpec((block_b, n), lambda i: (i, 0))

    def resident_spec(arr):
        # Full-array block, constant index -> stays VMEM-resident across grid steps.
        return pl.BlockSpec(arr.shape, lambda i: (0, 0))

    args = [x, eps]
    in_specs = [batch_spec(IN_DIM), batch_spec(LATENT)]
    for w, b in zip(weights, biases):
        args += [w, b]
        in_specs += [resident_spec(w), resident_spec(b)]

    out_shapes = (
        jax.ShapeDtypeStruct((B, IN_DIM), jnp.float32),   # x_hat
        jax.ShapeDtypeStruct((B, LATENT), jnp.float32),   # mu
        jax.ShapeDtypeStruct((B, LATENT), jnp.float32),   # log_var
    )
    out_specs = (batch_spec(IN_DIM), batch_spec(LATENT), batch_spec(LATENT))

    x_hat, mu, log_var = pl.pallas_call(
        vae_kernel,
        out_shape=out_shapes,
        grid=grid,
        in_specs=in_specs,
        out_specs=out_specs,
        compiler_params=pltpu.CompilerParams(
            dimension_semantics=("parallel",),      # shard batch steps across TCs
            vmem_limit_bytes=32 * 1024 * 1024,      # few-MB working set; headroom on v7x
        ),
    )(*args)

    return x_hat, mu, log_var


def init_params(key):
    """Deterministic init, shapes matching the PyTorch module (stored as (in, out))."""
    def linear(key, fan_in, fan_out):
        kw, kb = jax.random.split(key)
        bound = 1.0 / jnp.sqrt(fan_in)
        w = jax.random.uniform(kw, (fan_in, fan_out), jnp.float32, -bound, bound)
        b = jax.random.uniform(kb, (1, fan_out), jnp.float32, -bound, bound)
        return w, b

    keys = jax.random.split(key, 7)
    p = {}
    p["w1"], p["b1"] = linear(keys[0], IN_DIM, H1)     # encoder[0]
    p["w2"], p["b2"] = linear(keys[1], H1, H2)         # encoder[2]
    p["wmu"], p["bmu"] = linear(keys[2], H2, LATENT)   # mu head
    p["wlv"], p["blv"] = linear(keys[3], H2, LATENT)   # log_var head
    p["wd1"], p["bd1"] = linear(keys[4], LATENT, H2)   # decoder[0]
    p["wd2"], p["bd2"] = linear(keys[5], H2, H1)       # decoder[2]
    p["wd3"], p["bd3"] = linear(keys[6], H1, IN_DIM)   # decoder[4]
    return p


def vae_reference(x, eps, p, mat_dtype=jnp.float32):
    """Pure-JAX reference; mat_dtype mirrors the kernel's matmul-input precision."""
    def dot(a, w):
        return jnp.dot(a.astype(mat_dtype), w.astype(mat_dtype),
                       preferred_element_type=jnp.float32)
    h = _elu(dot(x, p["w1"]) + p["b1"])
    h = _elu(dot(h, p["w2"]) + p["b2"])
    mu = dot(h, p["wmu"]) + p["bmu"]
    log_var = dot(h, p["wlv"]) + p["blv"]
    z = mu + jnp.exp(log_var / 2.0) * eps
    d = _elu(dot(z, p["wd1"]) + p["bd1"])
    d = _elu(dot(d, p["wd2"]) + p["bd2"])
    x_hat = jax.nn.sigmoid(dot(d, p["wd3"]) + p["bd3"])
    return x_hat, mu, log_var


if __name__ == "__main__":
    key = jax.random.PRNGKey(0)
    k_params, k_x, k_eps, k_x2, k_eps2 = jax.random.split(key, 5)

    params = init_params(k_params)

    # --- small-batch smoke test (grid of 1, everything resident) ---
    B = 8
    x = jax.random.normal(k_x, (B, IN_DIM), dtype=jnp.float32)
    eps = jax.random.normal(k_eps, (B, LATENT), dtype=jnp.float32)

    x_hat, mu, log_var = vae_forward(x, eps, params, use_bf16=True)
    jax.block_until_ready((x_hat, mu, log_var))

    # Compare against a bf16-matmul-matched reference (tight) and f32 (loose sanity).
    rx, rmu, rlv = vae_reference(x, eps, params, mat_dtype=jnp.bfloat16)
    fx, _, _ = vae_reference(x, eps, params, mat_dtype=jnp.float32)
    assert jnp.allclose(x_hat, rx, atol=3e-3, rtol=1e-2), "x_hat mismatch (bf16 ref)"
    assert jnp.allclose(mu, rmu, atol=3e-3, rtol=1e-2), "mu mismatch (bf16 ref)"
    assert jnp.allclose(log_var, rlv, atol=3e-3, rtol=1e-2), "log_var mismatch (bf16 ref)"
    assert jnp.allclose(x_hat, fx, atol=6e-2, rtol=6e-2), "x_hat far from f32 ref"

    # --- batch-tiled, pipelined path (grid of 2, 'parallel' batch axis) ---
    B2 = 256
    x2 = jax.random.normal(k_x2, (B2, IN_DIM), dtype=jnp.float32)
    eps2 = jax.random.normal(k_eps2, (B2, LATENT), dtype=jnp.float32)
    x_hat2, mu2, lv2 = vae_forward(x2, eps2, params, block_b=128, use_bf16=True)
    jax.block_until_ready((x_hat2, mu2, lv2))

    rx2, rmu2, rlv2 = vae_reference(x2, eps2, params, mat_dtype=jnp.bfloat16)
    assert jnp.allclose(x_hat2, rx2, atol=3e-3, rtol=1e-2), "tiled x_hat mismatch"
    assert jnp.allclose(mu2, rmu2, atol=3e-3, rtol=1e-2), "tiled mu mismatch"
    assert jnp.allclose(lv2, rlv2, atol=3e-3, rtol=1e-2), "tiled log_var mismatch"

    print("KERNEL_OK")
</pallas_src>

<mosaic_0001>
module attributes {stable_mosaic.version = 11 : i64} {
  func.func @vae_kernel(%arg0: i32, %arg1: memref<8x784xf32, #tpu.memory_space<vmem>>, %arg2: memref<8x10xf32, #tpu.memory_space<vmem>>, %arg3: memref<784x128xbf16, #tpu.memory_space<vmem>>, %arg4: memref<1x128xf32, #tpu.memory_space<vmem>>, %arg5: memref<128x64xbf16, #tpu.memory_space<vmem>>, %arg6: memref<1x64xf32, #tpu.memory_space<vmem>>, %arg7: memref<64x20xbf16, #tpu.memory_space<vmem>>, %arg8: memref<1x20xf32, #tpu.memory_space<vmem>>, %arg9: memref<10x64xbf16, #tpu.memory_space<vmem>>, %arg10: memref<1x64xf32, #tpu.memory_space<vmem>>, %arg11: memref<64x128xbf16, #tpu.memory_space<vmem>>, %arg12: memref<1x128xf32, #tpu.memory_space<vmem>>, %arg13: memref<128x784xbf16, #tpu.memory_space<vmem>>, %arg14: memref<1x784xf32, #tpu.memory_space<vmem>>, %arg15: memref<8x784xf32, #tpu.memory_space<vmem>>, %arg16: memref<8x10xf32, #tpu.memory_space<vmem>>, %arg17: memref<8x10xf32, #tpu.memory_space<vmem>>) attributes {dimension_semantics = [#tpu.dimension_semantics<parallel>], iteration_bounds = array<i64: 1>, scalar_prefetch = 0 : i64, scratch_operands = 0 : i64, tpu.core_type = #tpu.core_type<tc>, window_params = [{transform_indices = @transform_0, window_bounds = array<i64: 8, 784>}, {transform_indices = @transform_1, window_bounds = array<i64: 8, 10>}, {pipeline_mode = #tpu.pipeline_mode<synchronous>, transform_indices = @transform_2, window_bounds = array<i64: 784, 128>}, {pipeline_mode = #tpu.pipeline_mode<synchronous>, transform_indices = @transform_3, window_bounds = array<i64: 1, 128>}, {pipeline_mode = #tpu.pipeline_mode<synchronous>, transform_indices = @transform_4, window_bounds = array<i64: 128, 64>}, {pipeline_mode = #tpu.pipeline_mode<synchronous>, transform_indices = @transform_5, window_bounds = array<i64: 1, 64>}, {pipeline_mode = #tpu.pipeline_mode<synchronous>, transform_indices = @transform_6, window_bounds = array<i64: 64, 20>}, {pipeline_mode = #tpu.pipeline_mode<synchronous>, transform_indices = @transform_7, window_bounds = array<i64: 1, 20>}, {pipeline_mode = #tpu.pipeline_mode<synchronous>, transform_indices = @transform_8, window_bounds = array<i64: 10, 64>}, {pipeline_mode = #tpu.pipeline_mode<synchronous>, transform_indices = @transform_9, window_bounds = array<i64: 1, 64>}, {pipeline_mode = #tpu.pipeline_mode<synchronous>, transform_indices = @transform_10, window_bounds = array<i64: 64, 128>}, {pipeline_mode = #tpu.pipeline_mode<synchronous>, transform_indices = @transform_11, window_bounds = array<i64: 1, 128>}, {pipeline_mode = #tpu.pipeline_mode<synchronous>, transform_indices = @transform_12, window_bounds = array<i64: 128, 784>}, {pipeline_mode = #tpu.pipeline_mode<synchronous>, transform_indices = @transform_13, window_bounds = array<i64: 1, 784>}, {transform_indices = @transform_14, window_bounds = array<i64: 8, 784>}, {transform_indices = @transform_15, window_bounds = array<i64: 8, 10>}, {transform_indices = @transform_16, window_bounds = array<i64: 8, 10>}]} {
    %c0 = arith.constant 0 : index
    %c0_0 = arith.constant 0 : index
    %0 = vector.load %arg1[%c0, %c0_0] : memref<8x784xf32, #tpu.memory_space<vmem>>, vector<8x784xf32>
    %1 = arith.truncf %0 : vector<8x784xf32> to vector<8x784xbf16>
    %c0_1 = arith.constant 0 : index
    %c0_2 = arith.constant 0 : index
    %2 = vector.load %arg2[%c0_1, %c0_2] : memref<8x10xf32, #tpu.memory_space<vmem>>, vector<8x10xf32>
    %c0_3 = arith.constant 0 : index
    %c0_4 = arith.constant 0 : index
    %3 = vector.load %arg3[%c0_3, %c0_4] : memref<784x128xbf16, #tpu.memory_space<vmem>>, vector<784x128xbf16>
    %cst = arith.constant dense<0.000000e+00> : vector<8x128xf32>
    %4 = tpu.matmul %1, %3, %cst {dimension_numbers = #tpu.dot_dimension_numbers<[1], [0], [0], [1], [0, 0, 1, 1], [], []>} : vector<8x784xbf16>, vector<784x128xbf16>, vector<8x128xf32> -> vector<8x128xf32>
    %c0_5 = arith.constant 0 : index
    %c0_6 = arith.constant 0 : index
    %5 = vector.load %arg4[%c0_5, %c0_6] : memref<1x128xf32, #tpu.memory_space<vmem>>, vector<1x128xf32>
    %6 = vector.broadcast %5 : vector<1x128xf32> to vector<8x128xf32>
    %7 = arith.addf %4, %6 : vector<8x128xf32>
    %cst_7 = arith.constant 0.000000e+00 : f32
    %8 = vector.broadcast %cst_7 : f32 to vector<8x128xf32>
    %9 = arith.cmpf ogt, %7, %8 : vector<8x128xf32>
    %cst_8 = arith.constant 0.000000e+00 : f32
    %10 = vector.broadcast %cst_8 : f32 to vector<8x128xf32>
    %11 = arith.minimumf %7, %10 : vector<8x128xf32>
    %12 = math.exp %11 : vector<8x128xf32>
    %cst_9 = arith.constant 1.000000e+00 : f32
    %13 = vector.broadcast %cst_9 : f32 to vector<8x128xf32>
    %14 = arith.subf %12, %13 : vector<8x128xf32>
    %15 = arith.select %9, %7, %14 : vector<8x128xi1>, vector<8x128xf32>
    %16 = arith.truncf %15 : vector<8x128xf32> to vector<8x128xbf16>
    %c0_10 = arith.constant 0 : index
    %c0_11 = arith.constant 0 : index
    %17 = vector.load %arg5[%c0_10, %c0_11] : memref<128x64xbf16, #tpu.memory_space<vmem>>, vector<128x64xbf16>
    %cst_12 = arith.constant dense<0.000000e+00> : vector<8x64xf32>
    %18 = tpu.matmul %16, %17, %cst_12 {dimension_numbers = #tpu.dot_dimension_numbers<[1], [0], [0], [1], [0, 0, 1, 1], [], []>} : vector<8x128xbf16>, vector<128x64xbf16>, vector<8x64xf32> -> vector<8x64xf32>
    %c0_13 = arith.constant 0 : index
    %c0_14 = arith.constant 0 : index
    %19 = vector.load %arg6[%c0_13, %c0_14] : memref<1x64xf32, #tpu.memory_space<vmem>>, vector<1x64xf32>
    %20 = vector.broadcast %19 : vector<1x64xf32> to vector<8x64xf32>
    %21 = arith.addf %18, %20 : vector<8x64xf32>
    %cst_15 = arith.constant 0.000000e+00 : f32
    %22 = vector.broadcast %cst_15 : f32 to vector<8x64xf32>
    %23 = arith.cmpf ogt, %21, %22 : vector<8x64xf32>
    %cst_16 = arith.constant 0.000000e+00 : f32
    %24 = vector.broadcast %cst_16 : f32 to vector<8x64xf32>
    %25 = arith.minimumf %21, %24 : vector<8x64xf32>
    %26 = math.exp %25 : vector<8x64xf32>
    %cst_17 = arith.constant 1.000000e+00 : f32
    %27 = vector.broadcast %cst_17 : f32 to vector<8x64xf32>
    %28 = arith.subf %26, %27 : vector<8x64xf32>
    %29 = arith.select %23, %21, %28 : vector<8x64xi1>, vector<8x64xf32>
    %30 = arith.truncf %29 : vector<8x64xf32> to vector<8x64xbf16>
    %c0_18 = arith.constant 0 : index
    %c0_19 = arith.constant 0 : index
    %31 = vector.load %arg7[%c0_18, %c0_19] : memref<64x20xbf16, #tpu.memory_space<vmem>>, vector<64x20xbf16>
    %cst_20 = arith.constant dense<0.000000e+00> : vector<8x20xf32>
    %32 = tpu.matmul %30, %31, %cst_20 {dimension_numbers = #tpu.dot_dimension_numbers<[1], [0], [0], [1], [0, 0, 1, 1], [], []>} : vector<8x64xbf16>, vector<64x20xbf16>, vector<8x20xf32> -> vector<8x20xf32>
    %c0_21 = arith.constant 0 : index
    %c0_22 = arith.constant 0 : index
    %33 = vector.load %arg8[%c0_21, %c0_22] : memref<1x20xf32, #tpu.memory_space<vmem>>, vector<1x20xf32>
    %34 = vector.broadcast %33 : vector<1x20xf32> to vector<8x20xf32>
    %35 = arith.addf %32, %34 : vector<8x20xf32>
    %36 = vector.extract_strided_slice %35 {offsets = [0, 0], sizes = [8, 10], strides = [1, 1]} : vector<8x20xf32> to vector<8x10xf32>
    %37 = vector.extract_strided_slice %35 {offsets = [0, 10], sizes = [8, 10], strides = [1, 1]} : vector<8x20xf32> to vector<8x10xf32>
    %cst_23 = arith.constant 5.000000e-01 : f32
    %38 = vector.broadcast %cst_23 : f32 to vector<8x10xf32>
    %39 = arith.mulf %37, %38 : vector<8x10xf32>
    %40 = math.exp %39 : vector<8x10xf32>
    %41 = arith.mulf %40, %2 : vector<8x10xf32>
    %42 = arith.addf %36, %41 : vector<8x10xf32>
    %43 = arith.truncf %42 : vector<8x10xf32> to vector<8x10xbf16>
    %c0_24 = arith.constant 0 : index
    %c0_25 = arith.constant 0 : index
    %44 = vector.load %arg9[%c0_24, %c0_25] : memref<10x64xbf16, #tpu.memory_space<vmem>>, vector<10x64xbf16>
    %cst_26 = arith.constant dense<0.000000e+00> : vector<8x64xf32>
    %45 = tpu.matmul %43, %44, %cst_26 {dimension_numbers = #tpu.dot_dimension_numbers<[1], [0], [0], [1], [0, 0, 1, 1], [], []>} : vector<8x10xbf16>, vector<10x64xbf16>, vector<8x64xf32> -> vector<8x64xf32>
    %c0_27 = arith.constant 0 : index
    %c0_28 = arith.constant 0 : index
    %46 = vector.load %arg10[%c0_27, %c0_28] : memref<1x64xf32, #tpu.memory_space<vmem>>, vector<1x64xf32>
    %47 = vector.broadcast %46 : vector<1x64xf32> to vector<8x64xf32>
    %48 = arith.addf %45, %47 : vector<8x64xf32>
    %cst_29 = arith.constant 0.000000e+00 : f32
    %49 = vector.broadcast %cst_29 : f32 to vector<8x64xf32>
    %50 = arith.cmpf ogt, %48, %49 : vector<8x64xf32>
    %cst_30 = arith.constant 0.000000e+00 : f32
    %51 = vector.broadcast %cst_30 : f32 to vector<8x64xf32>
    %52 = arith.minimumf %48, %51 : vector<8x64xf32>
    %53 = math.exp %52 : vector<8x64xf32>
    %cst_31 = arith.constant 1.000000e+00 : f32
    %54 = vector.broadcast %cst_31 : f32 to vector<8x64xf32>
    %55 = arith.subf %53, %54 : vector<8x64xf32>
    %56 = arith.select %50, %48, %55 : vector<8x64xi1>, vector<8x64xf32>
    %57 = arith.truncf %56 : vector<8x64xf32> to vector<8x64xbf16>
    %c0_32 = arith.constant 0 : index
    %c0_33 = arith.constant 0 : index
    %58 = vector.load %arg11[%c0_32, %c0_33] : memref<64x128xbf16, #tpu.memory_space<vmem>>, vector<64x128xbf16>
    %cst_34 = arith.constant dense<0.000000e+00> : vector<8x128xf32>
    %59 = tpu.matmul %57, %58, %cst_34 {dimension_numbers = #tpu.dot_dimension_numbers<[1], [0], [0], [1], [0, 0, 1, 1], [], []>} : vector<8x64xbf16>, vector<64x128xbf16>, vector<8x128xf32> -> vector<8x128xf32>
    %c0_35 = arith.constant 0 : index
    %c0_36 = arith.constant 0 : index
    %60 = vector.load %arg12[%c0_35, %c0_36] : memref<1x128xf32, #tpu.memory_space<vmem>>, vector<1x128xf32>
    %61 = vector.broadcast %60 : vector<1x128xf32> to vector<8x128xf32>
    %62 = arith.addf %59, %61 : vector<8x128xf32>
    %cst_37 = arith.constant 0.000000e+00 : f32
    %63 = vector.broadcast %cst_37 : f32 to vector<8x128xf32>
    %64 = arith.cmpf ogt, %62, %63 : vector<8x128xf32>
    %cst_38 = arith.constant 0.000000e+00 : f32
    %65 = vector.broadcast %cst_38 : f32 to vector<8x128xf32>
    %66 = arith.minimumf %62, %65 : vector<8x128xf32>
    %67 = math.exp %66 : vector<8x128xf32>
    %cst_39 = arith.constant 1.000000e+00 : f32
    %68 = vector.broadcast %cst_39 : f32 to vector<8x128xf32>
    %69 = arith.subf %67, %68 : vector<8x128xf32>
    %70 = arith.select %64, %62, %69 : vector<8x128xi1>, vector<8x128xf32>
    %71 = arith.truncf %70 : vector<8x128xf32> to vector<8x128xbf16>
    %c0_40 = arith.constant 0 : index
    %c0_41 = arith.constant 0 : index
    %72 = vector.load %arg13[%c0_40, %c0_41] : memref<128x784xbf16, #tpu.memory_space<vmem>>, vector<128x784xbf16>
    %cst_42 = arith.constant dense<0.000000e+00> : vector<8x784xf32>
    %73 = tpu.matmul %71, %72, %cst_42 {dimension_numbers = #tpu.dot_dimension_numbers<[1], [0], [0], [1], [0, 0, 1, 1], [], []>} : vector<8x128xbf16>, vector<128x784xbf16>, vector<8x784xf32> -> vector<8x784xf32>
    %c0_43 = arith.constant 0 : index
    %c0_44 = arith.constant 0 : index
    %74 = vector.load %arg14[%c0_43, %c0_44] : memref<1x784xf32, #tpu.memory_space<vmem>>, vector<1x784xf32>
    %75 = vector.broadcast %74 : vector<1x784xf32> to vector<8x784xf32>
    %76 = arith.addf %73, %75 : vector<8x784xf32>
    %77 = arith.negf %76 : vector<8x784xf32>
    %78 = math.exp %77 : vector<8x784xf32>
    %cst_45 = arith.constant 1.000000e+00 : f32
    %79 = vector.broadcast %cst_45 : f32 to vector<8x784xf32>
    %80 = arith.addf %79, %78 : vector<8x784xf32>
    %81 = arith.divf %79, %80 : vector<8x784xf32>
    %c0_46 = arith.constant 0 : index
    %c0_47 = arith.constant 0 : index
    %82 = vector.load %arg15[%c0_46, %c0_47] : memref<8x784xf32, #tpu.memory_space<vmem>>, vector<8x784xf32>
    tpu.vector_store %arg15[%c0_46, %c0_47], %81 {strides = array<i32>} : memref<8x784xf32, #tpu.memory_space<vmem>>, vector<8x784xf32>,
    %c0_48 = arith.constant 0 : index
    %c0_49 = arith.constant 0 : index
    %83 = vector.load %arg16[%c0_48, %c0_49] : memref<8x10xf32, #tpu.memory_space<vmem>>, vector<8x10xf32>
    tpu.vector_store %arg16[%c0_48, %c0_49], %36 {strides = array<i32>} : memref<8x10xf32, #tpu.memory_space<vmem>>, vector<8x10xf32>,
    %c0_50 = arith.constant 0 : index
    %c0_51 = arith.constant 0 : index
    %84 = vector.load %arg17[%c0_50, %c0_51] : memref<8x10xf32, #tpu.memory_space<vmem>>, vector<8x10xf32>
    tpu.vector_store %arg17[%c0_50, %c0_51], %37 {strides = array<i32>} : memref<8x10xf32, #tpu.memory_space<vmem>>, vector<8x10xf32>,
    return
  }
  func.func @transform_0(%arg0: i32) -> (i32, i32) {
    %c0_i32 = arith.constant 0 : i32
    %c0_i32_0 = arith.constant 0 : i32
    return %arg0, %c0_i32 : i32, i32
  }
  func.func @transform_1(%arg0: i32) -> (i32, i32) {
    %c0_i32 = arith.constant 0 : i32
    %c0_i32_0 = arith.constant 0 : i32
    return %arg0, %c0_i32 : i32, i32
  }
  func.func @transform_2(%arg0: i32) -> (i32, i32) {
    %c0_i32 = arith.constant 0 : i32
    %c0_i32_0 = arith.constant 0 : i32
    %c0_i32_1 = arith.constant 0 : i32
    return %c0_i32, %c0_i32_0 : i32, i32
  }
  func.func @transform_3(%arg0: i32) -> (i32, i32) {
    %c0_i32 = arith.constant 0 : i32
    %c0_i32_0 = arith.constant 0 : i32
    %c0_i32_1 = arith.constant 0 : i32
    return %c0_i32, %c0_i32_0 : i32, i32
  }
  func.func @transform_4(%arg0: i32) -> (i32, i32) {
    %c0_i32 = arith.constant 0 : i32
    %c0_i32_0 = arith.constant 0 : i32
    %c0_i32_1 = arith.constant 0 : i32
    return %c0_i32, %c0_i32_0 : i32, i32
  }
  func.func @transform_5(%arg0: i32) -> (i32, i32) {
    %c0_i32 = arith.constant 0 : i32
    %c0_i32_0 = arith.constant 0 : i32
    %c0_i32_1 = arith.constant 0 : i32
    return %c0_i32, %c0_i32_0 : i32, i32
  }
  func.func @transform_6(%arg0: i32) -> (i32, i32) {
    %c0_i32 = arith.constant 0 : i32
    %c0_i32_0 = arith.constant 0 : i32
    %c0_i32_1 = arith.constant 0 : i32
    return %c0_i32, %c0_i32_0 : i32, i32
  }
  func.func @transform_7(%arg0: i32) -> (i32, i32) {
    %c0_i32 = arith.constant 0 : i32
    %c0_i32_0 = arith.constant 0 : i32
    %c0_i32_1 = arith.constant 0 : i32
    return %c0_i32, %c0_i32_0 : i32, i32
  }
  func.func @transform_8(%arg0: i32) -> (i32, i32) {
    %c0_i32 = arith.constant 0 : i32
    %c0_i32_0 = arith.constant 0 : i32
    %c0_i32_1 = arith.constant 0 : i32
    return %c0_i32, %c0_i32_0 : i32, i32
  }
  func.func @transform_9(%arg0: i32) -> (i32, i32) {
    %c0_i32 = arith.constant 0 : i32
    %c0_i32_0 = arith.constant 0 : i32
    %c0_i32_1 = arith.constant 0 : i32
    return %c0_i32, %c0_i32_0 : i32, i32
  }
  func.func @transform_10(%arg0: i32) -> (i32, i32) {
    %c0_i32 = arith.constant 0 : i32
    %c0_i32_0 = arith.constant 0 : i32
    %c0_i32_1 = arith.constant 0 : i32
    return %c0_i32, %c0_i32_0 : i32, i32
  }
  func.func @transform_11(%arg0: i32) -> (i32, i32) {
    %c0_i32 = arith.constant 0 : i32
    %c0_i32_0 = arith.constant 0 : i32
    %c0_i32_1 = arith.constant 0 : i32
    return %c0_i32, %c0_i32_0 : i32, i32
  }
  func.func @transform_12(%arg0: i32) -> (i32, i32) {
    %c0_i32 = arith.constant 0 : i32
    %c0_i32_0 = arith.constant 0 : i32
    %c0_i32_1 = arith.constant 0 : i32
    return %c0_i32, %c0_i32_0 : i32, i32
  }
  func.func @transform_13(%arg0: i32) -> (i32, i32) {
    %c0_i32 = arith.constant 0 : i32
    %c0_i32_0 = arith.constant 0 : i32
    %c0_i32_1 = arith.constant 0 : i32
    return %c0_i32, %c0_i32_0 : i32, i32
  }
  func.func @transform_14(%arg0: i32) -> (i32, i32) {
    %c0_i32 = arith.constant 0 : i32
    %c0_i32_0 = arith.constant 0 : i32
    return %arg0, %c0_i32 : i32, i32
  }
  func.func @transform_15(%arg0: i32) -> (i32, i32) {
    %c0_i32 = arith.constant 0 : i32
    %c0_i32_0 = arith.constant 0 : i32
    return %arg0, %c0_i32 : i32, i32
  }
  func.func @transform_16(%arg0: i32) -> (i32, i32) {
    %c0_i32 = arith.constant 0 : i32
    %c0_i32_0 = arith.constant 0 : i32
    return %arg0, %c0_i32 : i32, i32
  }
}

</mosaic_0001>

<llo_original>
// kernel: tpu_custom_call.1
$region0: #{tpu_custom_call.1}
  #allocation0 [shape = 'u32[]', space=smem, size = 0x4, offset = 0x4, fixed_abs, tag = 'smem constant byte address 0x4 - core index']
  #allocation1 [shape = 'u32[72,128]{1,0:T(1,128)}', space=vmem, size = 0x9000, scoped, tag = 'internal scratch']
  %s0 = inlined_call_operand.vmem [shape: f32[8,784], index: 0, kind: input, shape index: {}]
  %s1 = inlined_call_operand.vmem [shape: f32[8,10], index: 1, kind: input, shape index: {}]
  %s2 = inlined_call_operand.vmem [shape: bf16[784,128], index: 2, kind: input, shape index: {}]
  %s3 = inlined_call_operand.vmem [shape: f32[1,128], index: 3, kind: input, shape index: {}]
  %s4 = inlined_call_operand.vmem [shape: bf16[128,64], index: 4, kind: input, shape index: {}]
  %s5 = inlined_call_operand.vmem [shape: f32[1,64], index: 5, kind: input, shape index: {}]
  %s6 = inlined_call_operand.vmem [shape: bf16[64,20], index: 6, kind: input, shape index: {}]
  %s7 = inlined_call_operand.vmem [shape: f32[1,20], index: 7, kind: input, shape index: {}]
  %s8 = inlined_call_operand.vmem [shape: bf16[10,64], index: 8, kind: input, shape index: {}]
  %s9 = inlined_call_operand.vmem [shape: f32[1,64], index: 9, kind: input, shape index: {}]
  %s10 = inlined_call_operand.vmem [shape: bf16[64,128], index: 10, kind: input, shape index: {}]
  %s11 = inlined_call_operand.vmem [shape: f32[1,128], index: 11, kind: input, shape index: {}]
  %s12 = inlined_call_operand.vmem [shape: bf16[128,784], index: 12, kind: input, shape index: {}]
  %s13 = inlined_call_operand.vmem [shape: f32[1,784], index: 13, kind: input, shape index: {}]
  %s14 = inlined_call_operand.hbm [shape: f32[8,784], index: 14, kind: output, shape index: {0}]
  %s15 = inlined_call_operand.hbm [shape: f32[8,10], index: 15, kind: output, shape index: {1}]
  %s16 = inlined_call_operand.hbm [shape: f32[8,10], index: 16, kind: output, shape index: {2}]
  %17 = xla_tuple %s14, %s15, %s16
  %s18 = sld [smem:[#allocation0]]
  $region82: #{tpu_custom_call.1} parent=0
    _
  %s20 = ssub.s32 1, %s18
  %s21 = scalar_select 0, %s20, %s18
  $region1: #{tpu_custom_call.1} parent=0
    #allocation2 [shape = 'u8[28672]{0}', space=vmem, size = 0x7000, scoped, tag = 'output window, operand 0, single buffered']
    #allocation3 [shape = 's32[1]{0}', space=sflag, size = 0x4, scoped, tag = 'scoped memory for tpu_custom_call.1']
    #allocation4 [shape = 'u8[4096]{0}', space=vmem, size = 0x1000, scoped, tag = 'output window, operand 1, single buffered']
    #allocation5 [shape = 's32[1]{0}', space=sflag, size = 0x4, scoped, tag = 'scoped memory for tpu_custom_call.1']
    #allocation6 [shape = 'u8[4096]{0}', space=vmem, size = 0x1000, scoped, tag = 'output window, operand 2, single buffered']
    %22 = vsyncpa [#allocation3], 0
    %23 = vsyncpa [#allocation5], 0
    // Predicated region
    $region2: #{tpu_custom_call.1} parent=1 // pred_check
      _
    $region3: #{tpu_custom_call.1} parent=1 // pred_check_branch
      %25 = sbr.rel (0) target = $region5
    $region4: #{tpu_custom_call.1} parent=1 // pred_region
      _
    $region5: #{tpu_custom_call.1} parent=1 // pred_fallthru
      _
    // Predicated region
    $region6: #{tpu_custom_call.1} parent=1 // pred_check
      _
    $region7: #{tpu_custom_call.1} parent=1 // pred_check_branch
      %27 = sbr.rel (0) target = $region9
    $region8: #{tpu_custom_call.1} parent=1 // pred_region
      _
    $region9: #{tpu_custom_call.1} parent=1 // pred_fallthru
      _
    // Predicated region
    $region10: #{tpu_custom_call.1} parent=1 // pred_check
      _
    $region11: #{tpu_custom_call.1} parent=1 // pred_check_branch
      %29 = sbr.rel (0) target = $region13
    $region12: #{tpu_custom_call.1} parent=1 // pred_region
      _
    $region13: #{tpu_custom_call.1} parent=1 // pred_fallthru
      _
    // Predicated region
    $region14: #{tpu_custom_call.1} parent=1 // pred_check
      _
    $region15: #{tpu_custom_call.1} parent=1 // pred_check_branch
      %31 = sbr.rel (0) target = $region17
    $region16: #{tpu_custom_call.1} parent=1 // pred_region
      _
    $region17: #{tpu_custom_call.1} parent=1 // pred_fallthru
      _
    // Predicated region
    $region18: #{tpu_custom_call.1} parent=1 // pred_check
      _
    $region19: #{tpu_custom_call.1} parent=1 // pred_check_branch
      %33 = sbr.rel (0) target = $region21
    $region20: #{tpu_custom_call.1} parent=1 // pred_region
      _
    $region21: #{tpu_custom_call.1} parent=1 // pred_fallthru
      _
    // Predicated region
    $region22: #{tpu_custom_call.1} parent=1 // pred_check
      _
    $region23: #{tpu_custom_call.1} parent=1 // pred_check_branch
      %35 = sbr.rel (0) target = $region25
    $region24: #{tpu_custom_call.1} parent=1 // pred_region
      _
    $region25: #{tpu_custom_call.1} parent=1 // pred_fallthru
      _
    // Predicated region
    $region26: #{tpu_custom_call.1} parent=1 // pred_check
      _
    $region27: #{tpu_custom_call.1} parent=1 // pred_check_branch
      %37 = sbr.rel (0) target = $region29
    $region28: #{tpu_custom_call.1} parent=1 // pred_region
      _
    $region29: #{tpu_custom_call.1} parent=1 // pred_fallthru
      _
    // Predicated region
    $region30: #{tpu_custom_call.1} parent=1 // pred_check
      _
    $region31: #{tpu_custom_call.1} parent=1 // pred_check_branch
      %39 = sbr.rel (0) target = $region33
    $region32: #{tpu_custom_call.1} parent=1 // pred_region
      _
    $region33: #{tpu_custom_call.1} parent=1 // pred_fallthru
      _
    // Predicated region
    $region34: #{tpu_custom_call.1} parent=1 // pred_check
      _
    $region35: #{tpu_custom_call.1} parent=1 // pred_check_branch
      %41 = sbr.rel (0) target = $region37
    $region36: #{tpu_custom_call.1} parent=1 // pred_region
      _
    $region37: #{tpu_custom_call.1} parent=1 // pred_fallthru
      _
    // Predicated region
    $region38: #{tpu_custom_call.1} parent=1 // pred_check
      _
    $region39: #{tpu_custom_call.1} parent=1 // pred_check_branch
      %43 = sbr.rel (0) target = $region41
    $region40: #{tpu_custom_call.1} parent=1 // pred_region
      _
    $region41: #{tpu_custom_call.1} parent=1 // pred_fallthru
      _
    // Predicated region
    $region42: #{tpu_custom_call.1} parent=1 // pred_check
      _
    $region43: #{tpu_custom_call.1} parent=1 // pred_check_branch
      %45 = sbr.rel (0) target = $region45
    $region44: #{tpu_custom_call.1} parent=1 // pred_region
      _
    $region45: #{tpu_custom_call.1} parent=1 // pred_fallthru
      _
    // Predicated region
    $region46: #{tpu_custom_call.1} parent=1 // pred_check
      _
    $region47: #{tpu_custom_call.1} parent=1 // pred_check_branch
      %47 = sbr.rel (0) target = $region49
    $region48: #{tpu_custom_call.1} parent=1 // pred_region
      _
    $region49: #{tpu_custom_call.1} parent=1 // pred_fallthru
      _
    // Predicated region
    $region50: #{tpu_custom_call.1} parent=1 // pred_check
      _
    $region51: #{tpu_custom_call.1} parent=1 // pred_check_branch
      %49 = sbr.rel (0) target = $region53
    $region52: #{tpu_custom_call.1} parent=1 // pred_region
      _
    $region53: #{tpu_custom_call.1} parent=1 // pred_fallthru
      _
    // Predicated region
    $region54: #{tpu_custom_call.1} parent=1 // pred_check
      _
    $region55: #{tpu_custom_call.1} parent=1 // pred_check_branch
      %51 = sbr.rel (0) target = $region57
    $region56: #{tpu_custom_call.1} parent=1 // pred_region
      _
    $region57: #{tpu_custom_call.1} parent=1 // pred_fallthru
      _
    %v53 = vld [vmem:[%s0] sm:$0xff]
    %v54 = vld [vmem:[%s0 + $0x8] sm:$0xff]
    %v55 = vld [vmem:[%s0 + $0x10] sm:$0xff]
    %v56 = vld [vmem:[%s0 + $0x18] sm:$0xff]
    %v57 = vld [vmem:[%s0 + $0x20] sm:$0xff]
    %v58 = vld [vmem:[%s0 + $0x28] sm:$0xff]
    %v59 = vld [vmem:[%s0 + $0x30] sm:$0xff]
    %v60 = vpack.c.bf16 %v53, %v53
    %v61 = vpack.c.bf16 %v54, %v54
    %v62 = vpack.c.bf16 %v55, %v55
    %v63 = vpack.c.bf16 %v56, %v56
    %v64 = vpack.c.bf16 %v57, %v57
    %v65 = vpack.c.bf16 %v58, %v58
    %v66 = vpack.c.bf16 %v59, %v59
    %v67 = vld [vmem:[%s1] sm:$0xff]
    %v68 = vld [vmem:[%s2] sm:$0xf]
    %v69 = vld [vmem:[%s2 + $0x4] sm:$0xf]
    %v70 = vld [vmem:[%s2 + $0x8] sm:$0xf]
    %v71 = vld [vmem:[%s2 + $0xc] sm:$0xf]
    %v72 = vld [vmem:[%s2 + $0x10] sm:$0xf]
    %v73 = vld [vmem:[%s2 + $0x14] sm:$0xf]
    %v74 = vld [vmem:[%s2 + $0x18] sm:$0xf]
    %v75 = vld [vmem:[%s2 + $0x1c] sm:$0xf]
    %v76 = vld [vmem:[%s2 + $0x20] sm:$0xf]
    %v77 = vld [vmem:[%s2 + $0x24] sm:$0xf]
    %v78 = vld [vmem:[%s2 + $0x28] sm:$0xf]
    %v79 = vld [vmem:[%s2 + $0x2c] sm:$0xf]
    %v80 = vld [vmem:[%s2 + $0x30] sm:$0xf]
    %v81 = vld [vmem:[%s2 + $0x34] sm:$0xf]
    %v82 = vld [vmem:[%s2 + $0x38] sm:$0xf]
    %v83 = vld [vmem:[%s2 + $0x3c] sm:$0xf]
    %v84 = vld [vmem:[%s2 + $0x40] sm:$0xf]
    %v85 = vld [vmem:[%s2 + $0x44] sm:$0xf]
    %v86 = vld [vmem:[%s2 + $0x48] sm:$0xf]
    %v87 = vld [vmem:[%s2 + $0x4c] sm:$0xf]
    %v88 = vld [vmem:[%s2 + $0x50] sm:$0xf]
    %v89 = vld [vmem:[%s2 + $0x54] sm:$0xf]
    %v90 = vld [vmem:[%s2 + $0x58] sm:$0xf]
    %v91 = vld [vmem:[%s2 + $0x5c] sm:$0xf]
    %v92 = vld [vmem:[%s2 + $0x60] sm:$0xf]
    %v93 = vld [vmem:[%s2 + $0x64] sm:$0xf]
    %v94 = vld [vmem:[%s2 + $0x68] sm:$0xf]
    %v95 = vld [vmem:[%s2 + $0x6c] sm:$0xf]
    %v96 = vld [vmem:[%s2 + $0x70] sm:$0xf]
    %v97 = vld [vmem:[%s2 + $0x74] sm:$0xf]
    %v98 = vld [vmem:[%s2 + $0x78] sm:$0xf]
    %v99 = vld [vmem:[%s2 + $0x7c] sm:$0xf]
    %v100 = vld [vmem:[%s2 + $0x80] sm:$0xf]
    %v101 = vld [vmem:[%s2 + $0x84] sm:$0xf]
    %v102 = vld [vmem:[%s2 + $0x88] sm:$0xf]
    %v103 = vld [vmem:[%s2 + $0x8c] sm:$0xf]
    %v104 = vld [vmem:[%s2 + $0x90] sm:$0xf]
    %v105 = vld [vmem:[%s2 + $0x94] sm:$0xf]
    %v106 = vld [vmem:[%s2 + $0x98] sm:$0xf]
    %v107 = vld [vmem:[%s2 + $0x9c] sm:$0xf]
    %v108 = vld [vmem:[%s2 + $0xa0] sm:$0xf]
    %v109 = vld [vmem:[%s2 + $0xa4] sm:$0xf]
    %v110 = vld [vmem:[%s2 + $0xa8] sm:$0xf]
    %v111 = vld [vmem:[%s2 + $0xac] sm:$0xf]
    %v112 = vld [vmem:[%s2 + $0xb0] sm:$0xf]
    %v113 = vld [vmem:[%s2 + $0xb4] sm:$0xf]
    %v114 = vld [vmem:[%s2 + $0xb8] sm:$0xf]
    %v115 = vld [vmem:[%s2 + $0xbc] sm:$0xf]
    %v116 = vld [vmem:[%s2 + $0xc0] sm:$0xf]
    %v117 = vld [vmem:[%s2 + $0xc4] sm:$0xf]
    %v118 = vld [vmem:[%s2 + $0xc8] sm:$0xf]
    %v119 = vld [vmem:[%s2 + $0xcc] sm:$0xf]
    %v120 = vld [vmem:[%s2 + $0xd0] sm:$0xf]
    %v121 = vld [vmem:[%s2 + $0xd4] sm:$0xf]
    %v122 = vld [vmem:[%s2 + $0xd8] sm:$0xf]
    %v123 = vld [vmem:[%s2 + $0xdc] sm:$0xf]
    %v124 = vld [vmem:[%s2 + $0xe0] sm:$0xf]
    %v125 = vld [vmem:[%s2 + $0xe4] sm:$0xf]
    %v126 = vld [vmem:[%s2 + $0xe8] sm:$0xf]
    %v127 = vld [vmem:[%s2 + $0xec] sm:$0xf]
    %v128 = vld [vmem:[%s2 + $0xf0] sm:$0xf]
    %v129 = vld [vmem:[%s2 + $0xf4] sm:$0xf]
    %v130 = vld [vmem:[%s2 + $0xf8] sm:$0xf]
    %v131 = vld [vmem:[%s2 + $0xfc] sm:$0xf]
    %v132 = vld [vmem:[%s2 + $0x100] sm:$0xf]
    %v133 = vld [vmem:[%s2 + $0x104] sm:$0xf]
    %v134 = vld [vmem:[%s2 + $0x108] sm:$0xf]
    %v135 = vld [vmem:[%s2 + $0x10c] sm:$0xf]
    %v136 = vld [vmem:[%s2 + $0x110] sm:$0xf]
    %v137 = vld [vmem:[%s2 + $0x114] sm:$0xf]
    %v138 = vld [vmem:[%s2 + $0x118] sm:$0xf]
    %v139 = vld [vmem:[%s2 + $0x11c] sm:$0xf]
    %v140 = vld [vmem:[%s2 + $0x120] sm:$0xf]
    %v141 = vld [vmem:[%s2 + $0x124] sm:$0xf]
    %v142 = vld [vmem:[%s2 + $0x128] sm:$0xf]
    %v143 = vld [vmem:[%s2 + $0x12c] sm:$0xf]
    %v144 = vld [vmem:[%s2 + $0x130] sm:$0xf]
    %v145 = vld [vmem:[%s2 + $0x134] sm:$0xf]
    %v146 = vld [vmem:[%s2 + $0x138] sm:$0xf]
    %v147 = vld [vmem:[%s2 + $0x13c] sm:$0xf]
    %v148 = vld [vmem:[%s2 + $0x140] sm:$0xf]
    %v149 = vld [vmem:[%s2 + $0x144] sm:$0xf]
    %v150 = vld [vmem:[%s2 + $0x148] sm:$0xf]
    %v151 = vld [vmem:[%s2 + $0x14c] sm:$0xf]
    %v152 = vld [vmem:[%s2 + $0x150] sm:$0xf]
    %v153 = vld [vmem:[%s2 + $0x154] sm:$0xf]
    %v154 = vld [vmem:[%s2 + $0x158] sm:$0xf]
    %v155 = vld [vmem:[%s2 + $0x15c] sm:$0xf]
    %v156 = vld [vmem:[%s2 + $0x160] sm:$0xf]
    %v157 = vld [vmem:[%s2 + $0x164] sm:$0xf]
    %v158 = vld [vmem:[%s2 + $0x168] sm:$0xf]
    %v159 = vld [vmem:[%s2 + $0x16c] sm:$0xf]
    %v160 = vld [vmem:[%s2 + $0x170] sm:$0xf]
    %v161 = vld [vmem:[%s2 + $0x174] sm:$0xf]
    %v162 = vld [vmem:[%s2 + $0x178] sm:$0xf]
    %v163 = vld [vmem:[%s2 + $0x17c] sm:$0xf]
    %v164 = vld [vmem:[%s2 + $0x180] sm:$0xf]
    %v165 = vld [vmem:[%s2 + $0x184] sm:$0xf]
    %v166 = vld [vmem:[%s3] sm:$0x1]
    %v168 = vperm.slane %v166, 0
    %v268 = vunpack.c.l.b16 %v68
    %v269 = vunpack.c.l.b16 %v69
    %v270 = vunpack.c.l.b16 %v70
    %v271 = vunpack.c.l.b16 %v71
    %v272 = vunpack.c.l.b16 %v72
    %v273 = vunpack.c.l.b16 %v73
    %v274 = vunpack.c.l.b16 %v74
    %v275 = vunpack.c.l.b16 %v75
    %v276 = vunpack.c.l.b16 %v76
    %v277 = vunpack.c.l.b16 %v77
    %v278 = vunpack.c.l.b16 %v78
    %v279 = vunpack.c.l.b16 %v79
    %v280 = vunpack.c.l.b16 %v80
    %v281 = vunpack.c.l.b16 %v81
    %v282 = vunpack.c.l.b16 %v82
    %v283 = vunpack.c.l.b16 %v83
    %v284 = vunpack.c.l.b16 %v84
    %v285 = vunpack.c.l.b16 %v85
    %v286 = vunpack.c.l.b16 %v86
    %v287 = vunpack.c.l.b16 %v87
    %v288 = vunpack.c.l.b16 %v88
    %v289 = vunpack.c.l.b16 %v89
    %v290 = vunpack.c.l.b16 %v90
    %v291 = vunpack.c.l.b16 %v91
    %v292 = vunpack.c.l.b16 %v92
    %v293 = vunpack.c.l.b16 %v93
    %v294 = vunpack.c.l.b16 %v94
    %v295 = vunpack.c.l.b16 %v95
    %v296 = vunpack.c.l.b16 %v96
    %v297 = vunpack.c.l.b16 %v97
    %v298 = vunpack.c.l.b16 %v98
    %v299 = vunpack.c.l.b16 %v99
    %v300 = vunpack.c.l.b16 %v100
    %v301 = vunpack.c.l.b16 %v101
    %v302 = vunpack.c.l.b16 %v102
    %v303 = vunpack.c.l.b16 %v103
    %v304 = vunpack.c.l.b16 %v104
    %v305 = vunpack.c.l.b16 %v105
    %v306 = vunpack.c.l.b16 %v106
    %v307 = vunpack.c.l.b16 %v107
    %v308 = vunpack.c.l.b16 %v108
    %v309 = vunpack.c.l.b16 %v109
    %v310 = vunpack.c.l.b16 %v110
    %v311 = vunpack.c.l.b16 %v111
    %v312 = vunpack.c.l.b16 %v112
    %v313 = vunpack.c.l.b16 %v113
    %v314 = vunpack.c.l.b16 %v114
    %v315 = vunpack.c.l.b16 %v115
    %v316 = vunpack.c.l.b16 %v116
    %v317 = vunpack.c.l.b16 %v117
    %v318 = vunpack.c.l.b16 %v118
    %v319 = vunpack.c.l.b16 %v119
    %v320 = vunpack.c.l.b16 %v120
    %v321 = vunpack.c.l.b16 %v121
    %v322 = vunpack.c.l.b16 %v122
    %v323 = vunpack.c.l.b16 %v123
    %v324 = vunpack.c.l.b16 %v124
    %v325 = vunpack.c.l.b16 %v125
    %v326 = vunpack.c.l.b16 %v126
    %v327 = vunpack.c.l.b16 %v127
    %v328 = vunpack.c.l.b16 %v128
    %v329 = vunpack.c.l.b16 %v129
    %v330 = vunpack.c.l.b16 %v130
    %v331 = vunpack.c.l.b16 %v131
    %v332 = vunpack.c.l.b16 %v132
    %v333 = vunpack.c.l.b16 %v133
    %v334 = vunpack.c.l.b16 %v134
    %v335 = vunpack.c.l.b16 %v135
    %v336 = vunpack.c.l.b16 %v136
    %v337 = vunpack.c.l.b16 %v137
    %v338 = vunpack.c.l.b16 %v138
    %v339 = vunpack.c.l.b16 %v139
    %v340 = vunpack.c.l.b16 %v140
    %v341 = vunpack.c.l.b16 %v141
    %v342 = vunpack.c.l.b16 %v142
    %v343 = vunpack.c.l.b16 %v143
    %v344 = vunpack.c.l.b16 %v144
    %v345 = vunpack.c.l.b16 %v145
    %v346 = vunpack.c.l.b16 %v146
    %v347 = vunpack.c.l.b16 %v147
    %v348 = vunpack.c.l.b16 %v148
    %v349 = vunpack.c.l.b16 %v149
    %v350 = vunpack.c.l.b16 %v150
    %v351 = vunpack.c.l.b16 %v151
    %v352 = vunpack.c.l.b16 %v152
    %v353 = vunpack.c.l.b16 %v153
    %v354 = vunpack.c.l.b16 %v154
    %v355 = vunpack.c.l.b16 %v155
    %v356 = vunpack.c.l.b16 %v156
    %v357 = vunpack.c.l.b16 %v157
    %v358 = vunpack.c.l.b16 %v158
    %v359 = vunpack.c.l.b16 %v159
    %v360 = vunpack.c.l.b16 %v160
    %v361 = vunpack.c.l.b16 %v161
    %v362 = vunpack.c.l.b16 %v162
    %v363 = vunpack.c.l.b16 %v163
    %v364 = vunpack.c.l.b16 %v164
    %v365 = vunpack.c.l.b16 %v165
    %v366 = vpack.c.b16 %v269, %v268
    %v367 = vpack.c.b16 %v271, %v270
    %v368 = vpack.c.b16 %v273, %v272
    %v369 = vpack.c.b16 %v275, %v274
    %v370 = vpack.c.b16 %v277, %v276
    %v371 = vpack.c.b16 %v279, %v278
    %v372 = vpack.c.b16 %v281, %v280
    %v373 = vpack.c.b16 %v283, %v282
    %v374 = vpack.c.b16 %v285, %v284
    %v375 = vpack.c.b16 %v287, %v286
    %v376 = vpack.c.b16 %v289, %v288
    %v377 = vpack.c.b16 %v291, %v290
    %v378 = vpack.c.b16 %v293, %v292
    %v379 = vpack.c.b16 %v295, %v294
    %v380 = vpack.c.b16 %v297, %v296
    %v381 = vpack.c.b16 %v299, %v298
    %v382 = vpack.c.b16 %v301, %v300
    %v383 = vpack.c.b16 %v303, %v302
    %v384 = vpack.c.b16 %v305, %v304
    %v385 = vpack.c.b16 %v307, %v306
    %v386 = vpack.c.b16 %v309, %v308
    %v387 = vpack.c.b16 %v311, %v310
    %v388 = vpack.c.b16 %v313, %v312
    %v389 = vpack.c.b16 %v315, %v314
    %v390 = vpack.c.b16 %v317, %v316
    %v391 = vpack.c.b16 %v319, %v318
    %v392 = vpack.c.b16 %v321, %v320
    %v393 = vpack.c.b16 %v323, %v322
    %v394 = vpack.c.b16 %v325, %v324
    %v395 = vpack.c.b16 %v327, %v326
    %v396 = vpack.c.b16 %v329, %v328
    %v397 = vpack.c.b16 %v331, %v330
    %v398 = vpack.c.b16 %v333, %v332
    %v399 = vpack.c.b16 %v335, %v334
    %v400 = vpack.c.b16 %v337, %v336
    %v401 = vpack.c.b16 %v339, %v338
    %v402 = vpack.c.b16 %v341, %v340
    %v403 = vpack.c.b16 %v343, %v342
    %v404 = vpack.c.b16 %v345, %v344
    %v405 = vpack.c.b16 %v347, %v346
    %v406 = vpack.c.b16 %v349, %v348
    %v407 = vpack.c.b16 %v351, %v350
    %v408 = vpack.c.b16 %v353, %v352
    %v409 = vpack.c.b16 %v355, %v354
    %v410 = vpack.c.b16 %v357, %v356
    %v411 = vpack.c.b16 %v359, %v358
    %v412 = vpack.c.b16 %v361, %v360
    %v413 = vpack.c.b16 %v363, %v362
    %v414 = vpack.c.b16 %v365, %v364
    %vm464 = vcmask 130048
    %v466 = vsel %vm464, %v66, 0
    %468 = vmatpush.bf16.msra.mxu0 %v373
    %469 = vmatpush.bf16.msra.mxu0 %v372
    %470 = vmatpush.bf16.msra.mxu0 %v371
    %471 = vmatpush.bf16.msra.mxu0 %v370
    %472 = vmatpush.bf16.msra.mxu0 %v369
    %473 = vmatpush.bf16.msra.mxu0 %v368
    %474 = vmatpush.bf16.msra.mxu0 %v367
    %475 = vmatpush.bf16.msra.mxu0 %v366
    %476 = vmatmul.bf16.gmra.mxu0 %v60
    %v477 = vpop.f32.mrf.mxu0
    %v478 = vadd.f32 %v168, %v477
    %v479 = vpop.f32.mrf.mxu0
    %480 = vdwg.mxu0
    %481 = vmatpush.bf16.msra.mxu0 %v381
    %482 = vmatpush.bf16.msra.mxu0 %v380
    %483 = vmatpush.bf16.msra.mxu0 %v379
    %484 = vmatpush.bf16.msra.mxu0 %v378
    %485 = vmatpush.bf16.msra.mxu0 %v377
    %486 = vmatpush.bf16.msra.mxu0 %v376
    %487 = vmatpush.bf16.msra.mxu0 %v375
    %488 = vmatpush.bf16.msra.mxu0 %v374
    %489 = vmatmul.bf16.gmra.mxu0 %v61
    %v490 = vpop.f32.mrf.mxu0
    %v491 = vadd.f32 %v478, %v490
    %v492 = vpop.f32.mrf.mxu0
    %493 = vdwg.mxu0
    %494 = vmatpush.bf16.msra.mxu0 %v389
    %495 = vmatpush.bf16.msra.mxu0 %v388
    %496 = vmatpush.bf16.msra.mxu0 %v387
    %497 = vmatpush.bf16.msra.mxu0 %v386
    %498 = vmatpush.bf16.msra.mxu0 %v385
    %499 = vmatpush.bf16.msra.mxu0 %v384
    %500 = vmatpush.bf16.msra.mxu0 %v383
    %501 = vmatpush.bf16.msra.mxu0 %v382
    %502 = vmatmul.bf16.gmra.mxu0 %v62
    %v503 = vpop.f32.mrf.mxu0
    %v504 = vadd.f32 %v491, %v503
    %v505 = vpop.f32.mrf.mxu0
    %506 = vdwg.mxu0
    %507 = vmatpush.bf16.msra.mxu0 %v397
    %508 = vmatpush.bf16.msra.mxu0 %v396
    %509 = vmatpush.bf16.msra.mxu0 %v395
    %510 = vmatpush.bf16.msra.mxu0 %v394
    %511 = vmatpush.bf16.msra.mxu0 %v393
    %512 = vmatpush.bf16.msra.mxu0 %v392
    %513 = vmatpush.bf16.msra.mxu0 %v391
    %514 = vmatpush.bf16.msra.mxu0 %v390
    %515 = vmatmul.bf16.gmra.mxu0 %v63
    %v516 = vpop.f32.mrf.mxu0
    %v517 = vadd.f32 %v504, %v516
    %v518 = vpop.f32.mrf.mxu0
    %519 = vdwg.mxu0
    %520 = vmatpush.bf16.msra.mxu0 %v405
    %521 = vmatpush.bf16.msra.mxu0 %v404
    %522 = vmatpush.bf16.msra.mxu0 %v403
    %523 = vmatpush.bf16.msra.mxu0 %v402
    %524 = vmatpush.bf16.msra.mxu0 %v401
    %525 = vmatpush.bf16.msra.mxu0 %v400
    %526 = vmatpush.bf16.msra.mxu0 %v399
    %527 = vmatpush.bf16.msra.mxu0 %v398
    %528 = vmatmul.bf16.gmra.mxu0 %v64
    %v529 = vpop.f32.mrf.mxu0
    %v530 = vadd.f32 %v517, %v529
    %v531 = vpop.f32.mrf.mxu0
    %532 = vdwg.mxu0
    %533 = vmatpush.bf16.msra.mxu0 %v413
    %534 = vmatpush.bf16.msra.mxu0 %v412
    %535 = vmatpush.bf16.msra.mxu0 %v411
    %536 = vmatpush.bf16.msra.mxu0 %v410
    %537 = vmatpush.bf16.msra.mxu0 %v409
    %538 = vmatpush.bf16.msra.mxu0 %v408
    %539 = vmatpush.bf16.msra.mxu0 %v407
    %540 = vmatpush.bf16.msra.mxu0 %v406
    %541 = vmatmul.bf16.gmra.mxu0 %v65
    %v542 = vpop.f32.mrf.mxu0
    %v543 = vadd.f32 %v530, %v542
    %v544 = vpop.f32.mrf.mxu0
    %545 = vdwg.mxu0
    %546 = vmatpush.bf16.msra.mxu0 0
    %547 = vmatpush.bf16.msra.mxu0 0
    %548 = vmatpush.bf16.msra.mxu0 0
    %549 = vmatpush.bf16.msra.mxu0 0
    %550 = vmatpush.bf16.msra.mxu0 0
    %551 = vmatpush.bf16.msra.mxu0 0
    %552 = vmatpush.bf16.msra.mxu0 0
    %553 = vmatpush.bf16.msra.mxu0 %v414
    %554 = vmatmul.bf16.gmra.mxu0 %v466
    %v555 = vpop.f32.mrf.mxu0
    %v556 = vadd.f32 %v543, %v555
    %v557 = vpop.f32.mrf.mxu0
    %558 = vdwg.mxu0
    %vm559 = vcmp.gt.f32.partialorder %v556, 0.0
    %v560 = vmin.f32 %v556, 0.0
    %v561 = vmul.f32 %v560, 1.442695
    %v562 = vpow.pop %v561
    %v563 = vsub.f32 %v562, 1.0
    %v564 = vsel %vm559, %v556, %v563
    %v565 = vpack.c.bf16 %v564, %v564
    %v566 = vld [vmem:[%s4] sm:$0xf]
    %v567 = vld [vmem:[%s4 + $0x4] sm:$0xf]
    %v568 = vld [vmem:[%s4 + $0x8] sm:$0xf]
    %v569 = vld [vmem:[%s4 + $0xc] sm:$0xf]
    %v570 = vld [vmem:[%s4 + $0x10] sm:$0xf]
    %v571 = vld [vmem:[%s4 + $0x14] sm:$0xf]
    %v572 = vld [vmem:[%s4 + $0x18] sm:$0xf]
    %v573 = vld [vmem:[%s4 + $0x1c] sm:$0xf]
    %v574 = vld [vmem:[%s4 + $0x20] sm:$0xf]
    %v575 = vld [vmem:[%s4 + $0x24] sm:$0xf]
    %v576 = vld [vmem:[%s4 + $0x28] sm:$0xf]
    %v577 = vld [vmem:[%s4 + $0x2c] sm:$0xf]
    %v578 = vld [vmem:[%s4 + $0x30] sm:$0xf]
    %v579 = vld [vmem:[%s4 + $0x34] sm:$0xf]
    %v580 = vld [vmem:[%s4 + $0x38] sm:$0xf]
    %v581 = vld [vmem:[%s4 + $0x3c] sm:$0xf]
    %v582 = vld [vmem:[%s5] sm:$0x1]
    %v584 = vperm.slane %v582, 0
    %v602 = vunpack.c.l.b16 %v566
    %v603 = vunpack.c.l.b16 %v567
    %v604 = vunpack.c.l.b16 %v568
    %v605 = vunpack.c.l.b16 %v569
    %v606 = vunpack.c.l.b16 %v570
    %v607 = vunpack.c.l.b16 %v571
    %v608 = vunpack.c.l.b16 %v572
    %v609 = vunpack.c.l.b16 %v573
    %v610 = vunpack.c.l.b16 %v574
    %v611 = vunpack.c.l.b16 %v575
    %v612 = vunpack.c.l.b16 %v576
    %v613 = vunpack.c.l.b16 %v577
    %v614 = vunpack.c.l.b16 %v578
    %v615 = vunpack.c.l.b16 %v579
    %v616 = vunpack.c.l.b16 %v580
    %v617 = vunpack.c.l.b16 %v581
    %v618 = vpack.c.b16 %v603, %v602
    %v619 = vpack.c.b16 %v605, %v604
    %v620 = vpack.c.b16 %v607, %v606
    %v621 = vpack.c.b16 %v609, %v608
    %v622 = vpack.c.b16 %v611, %v610
    %v623 = vpack.c.b16 %v613, %v612
    %v624 = vpack.c.b16 %v615, %v614
    %v625 = vpack.c.b16 %v617, %v616
    %634 = vmatpush.bf16.msra.mxu0 %v625
    %635 = vmatpush.bf16.msra.mxu0 %v624
    %636 = vmatpush.bf16.msra.mxu0 %v623
    %637 = vmatpush.bf16.msra.mxu0 %v622
    %638 = vmatpush.bf16.msra.mxu0 %v621
    %639 = vmatpush.bf16.msra.mxu0 %v620
    %640 = vmatpush.bf16.msra.mxu0 %v619
    %641 = vmatpush.bf16.msra.mxu0 %v618
    %642 = vmatmul.bf16.gmra.mxu0 %v565
    %v643 = vpop.f32.mrf.mxu0
    %v644 = vadd.f32 %v584, %v643
    %v645 = vpop.f32.mrf.mxu0
    %646 = vdwg.mxu0
    %vm647 = vcmp.gt.f32.partialorder %v644, 0.0
    %v648 = vmin.f32 %v644, 0.0
    %v649 = vmul.f32 %v648, 1.442695
    %v650 = vpow.pop %v649
    %v651 = vsub.f32 %v650, 1.0
    %v652 = vsel %vm647, %v644, %v651
    %v653 = vpack.c.bf16 %v652, %v652
    %v654 = vld [vmem:[%s6] sm:$0xf]
    %v655 = vld [vmem:[%s6 + $0x4] sm:$0xf]
    %v656 = vld [vmem:[%s6 + $0x8] sm:$0xf]
    %v657 = vld [vmem:[%s6 + $0xc] sm:$0xf]
    %v658 = vld [vmem:[%s6 + $0x10] sm:$0xf]
    %v659 = vld [vmem:[%s6 + $0x14] sm:$0xf]
    %v660 = vld [vmem:[%s6 + $0x18] sm:$0xf]
    %v661 = vld [vmem:[%s6 + $0x1c] sm:$0xf]
    %v662 = vld [vmem:[%s7] sm:$0x1]
    %v664 = vperm.slane %v662, 0
    %v674 = vunpack.c.l.b16 %v654
    %v675 = vunpack.c.l.b16 %v655
    %v676 = vunpack.c.l.b16 %v656
    %v677 = vunpack.c.l.b16 %v657
    %v678 = vunpack.c.l.b16 %v658
    %v679 = vunpack.c.l.b16 %v659
    %v680 = vunpack.c.l.b16 %v660
    %v681 = vunpack.c.l.b16 %v661
    %v682 = vpack.c.b16 %v675, %v674
    %v683 = vpack.c.b16 %v677, %v676
    %v684 = vpack.c.b16 %v679, %v678
    %v685 = vpack.c.b16 %v681, %v680
    %vm690 = vcmask 523264
    %v692 = vsel %vm690, %v653, 0
    %694 = vmatpush.bf16.msra.mxu0 0
    %695 = vmatpush.bf16.msra.mxu0 0
    %696 = vmatpush.bf16.msra.mxu0 0
    %697 = vmatpush.bf16.msra.mxu0 0
    %698 = vmatpush.bf16.msra.mxu0 %v685
    %699 = vmatpush.bf16.msra.mxu0 %v684
    %700 = vmatpush.bf16.msra.mxu0 %v683
    %701 = vmatpush.bf16.msra.mxu0 %v682
    %702 = vmatmul.bf16.gmra.mxu0 %v692
    %v703 = vpop.f32.mrf.mxu0
    %v704 = vadd.f32 %v664, %v703
    %v705 = vpop.f32.mrf.mxu0
    %706 = vdwg.mxu0
    %v707 = vmul.f32 %v704, 0.5
    %v708 = vmul.f32 %v707, 1.442695
    %v709 = vpow.pop %v708
    %711 = vrot.lane.b32.xlu0 %v67, 10
    %v712 = vpop.permute.xlu0 %711
    %v714 = vmul.f32 %v709, %v712
    %716 = vrot.lane.b32.xlu0 %v714, 118
    %v717 = vpop.permute.xlu0 %716
    %v719 = vadd.f32 %v704, %v717
    %v720 = vpack.c.bf16 %v719, %v719
    %v721 = vld [vmem:[%s8] sm:$0xf]
    %v722 = vld [vmem:[%s8 + $0x4] sm:$0x1]
    %v723 = vld [vmem:[%s9] sm:$0x1]
    %v725 = vperm.slane %v723, 0
    %v729 = vunpack.c.l.b16 %v721
    %v730 = vunpack.c.l.b16 %v722
    %v731 = vpack.c.b16 %v730, %v729
    %vm732 = vcmask 80896
    %v734 = vsel %vm732, %v720, 0
    %vm736 = vcmask 1044480
    %v738 = vsel %vm736, %v731, 0
    %740 = vmatpush.bf16.msra.mxu0 0
    %741 = vmatpush.bf16.msra.mxu0 0
    %742 = vmatpush.bf16.msra.mxu0 0
    %743 = vmatpush.bf16.msra.mxu0 0
    %744 = vmatpush.bf16.msra.mxu0 0
    %745 = vmatpush.bf16.msra.mxu0 0
    %746 = vmatpush.bf16.msra.mxu0 0
    %747 = vmatpush.bf16.msra.mxu0 %v738
    %748 = vmatmul.bf16.gmra.mxu0 %v734
    %v749 = vpop.f32.mrf.mxu0
    %v750 = vadd.f32 %v725, %v749
    %v751 = vpop.f32.mrf.mxu0
    %752 = vdwg.mxu0
    %vm753 = vcmp.gt.f32.partialorder %v750, 0.0
    %v754 = vmin.f32 %v750, 0.0
    %v755 = vmul.f32 %v754, 1.442695
    %v756 = vpow.pop %v755
    %v757 = vsub.f32 %v756, 1.0
    %v758 = vsel %vm753, %v750, %v757
    %v759 = vpack.c.bf16 %v758, %v758
    %v760 = vld [vmem:[%s10] sm:$0xf]
    %v761 = vld [vmem:[%s10 + $0x4] sm:$0xf]
    %v762 = vld [vmem:[%s10 + $0x8] sm:$0xf]
    %v763 = vld [vmem:[%s10 + $0xc] sm:$0xf]
    %v764 = vld [vmem:[%s10 + $0x10] sm:$0xf]
    %v765 = vld [vmem:[%s10 + $0x14] sm:$0xf]
    %v766 = vld [vmem:[%s10 + $0x18] sm:$0xf]
    %v767 = vld [vmem:[%s10 + $0x1c] sm:$0xf]
    %v768 = vld [vmem:[%s11] sm:$0x1]
    %v770 = vperm.slane %v768, 0
    %v780 = vunpack.c.l.b16 %v760
    %v781 = vunpack.c.l.b16 %v761
    %v782 = vunpack.c.l.b16 %v762
    %v783 = vunpack.c.l.b16 %v763
    %v784 = vunpack.c.l.b16 %v764
    %v785 = vunpack.c.l.b16 %v765
    %v786 = vunpack.c.l.b16 %v766
    %v787 = vunpack.c.l.b16 %v767
    %v788 = vpack.c.b16 %v781, %v780
    %v789 = vpack.c.b16 %v783, %v782
    %v790 = vpack.c.b16 %v785, %v784
    %v791 = vpack.c.b16 %v787, %v786
    %v797 = vsel %vm690, %v759, 0
    %799 = vmatpush.bf16.msra.mxu0 0
    %800 = vmatpush.bf16.msra.mxu0 0
    %801 = vmatpush.bf16.msra.mxu0 0
    %802 = vmatpush.bf16.msra.mxu0 0
    %803 = vmatpush.bf16.msra.mxu0 %v791
    %804 = vmatpush.bf16.msra.mxu0 %v790
    %805 = vmatpush.bf16.msra.mxu0 %v789
    %806 = vmatpush.bf16.msra.mxu0 %v788
    %807 = vmatmul.bf16.gmra.mxu0 %v797
    %v808 = vpop.f32.mrf.mxu0
    %v809 = vadd.f32 %v770, %v808
    %v810 = vpop.f32.mrf.mxu0
    %811 = vdwg.mxu0
    %vm812 = vcmp.gt.f32.partialorder %v809, 0.0
    %v813 = vmin.f32 %v809, 0.0
    %v814 = vmul.f32 %v813, 1.442695
    %v815 = vpow.pop %v814
    %v816 = vsub.f32 %v815, 1.0
    %v817 = vsel %vm812, %v809, %v816
    %v818 = vpack.c.bf16 %v817, %v817
    %v819 = vld [vmem:[%s12] sm:$0xff]
    %v820 = vld [vmem:[%s12 + $0x8] sm:$0xff]
    %v821 = vld [vmem:[%s12 + $0x10] sm:$0xff]
    %v822 = vld [vmem:[%s12 + $0x18] sm:$0xf]
    %v823 = vld [vmem:[%s12 + $0x1c] sm:$0xff]
    %v824 = vld [vmem:[%s12 + $0x24] sm:$0xff]
    %v825 = vld [vmem:[%s12 + $0x2c] sm:$0xff]
    %v826 = vld [vmem:[%s12 + $0x34] sm:$0xf]
    %v827 = vld [vmem:[%s12 + $0x38] sm:$0xff]
    %v828 = vld [vmem:[%s12 + $0x40] sm:$0xff]
    %v829 = vld [vmem:[%s12 + $0x48] sm:$0xff]
    %v830 = vld [vmem:[%s12 + $0x50] sm:$0xf]
    %v831 = vld [vmem:[%s12 + $0x54] sm:$0xff]
    %v832 = vld [vmem:[%s12 + $0x5c] sm:$0xff]
    %v833 = vld [vmem:[%s12 + $0x64] sm:$0xff]
    %v834 = vld [vmem:[%s12 + $0x6c] sm:$0xf]
    %v835 = vld [vmem:[%s12 + $0x70] sm:$0xff]
    %v836 = vld [vmem:[%s12 + $0x78] sm:$0xff]
    %v837 = vld [vmem:[%s12 + $0x80] sm:$0xff]
    %v838 = vld [vmem:[%s12 + $0x88] sm:$0xf]
    %v839 = vld [vmem:[%s12 + $0x8c] sm:$0xff]
    %v840 = vld [vmem:[%s12 + $0x94] sm:$0xff]
    %v841 = vld [vmem:[%s12 + $0x9c] sm:$0xff]
    %v842 = vld [vmem:[%s12 + $0xa4] sm:$0xf]
    %v843 = vld [vmem:[%s12 + $0xa8] sm:$0xff]
    %v844 = vld [vmem:[%s12 + $0xb0] sm:$0xff]
    %v845 = vld [vmem:[%s12 + $0xb8] sm:$0xff]
    %v846 = vld [vmem:[%s12 + $0xc0] sm:$0xf]
    %v847 = vld [vmem:[%s12 + $0xc4] sm:$0xff]
    %v848 = vld [vmem:[%s12 + $0xcc] sm:$0xff]
    %v849 = vld [vmem:[%s12 + $0xd4] sm:$0xff]
    %v850 = vld [vmem:[%s12 + $0xdc] sm:$0xf]
    %v851 = vld [vmem:[%s12 + $0xe0] sm:$0xff]
    %v852 = vld [vmem:[%s12 + $0xe8] sm:$0xff]
    %v853 = vld [vmem:[%s12 + $0xf0] sm:$0xff]
    %v854 = vld [vmem:[%s12 + $0xf8] sm:$0xf]
    %v855 = vld [vmem:[%s12 + $0xfc] sm:$0xff]
    %v856 = vld [vmem:[%s12 + $0x104] sm:$0xff]
    %v857 = vld [vmem:[%s12 + $0x10c] sm:$0xff]
    %v858 = vld [vmem:[%s12 + $0x114] sm:$0xf]
    %v859 = vld [vmem:[%s12 + $0x118] sm:$0xff]
    %v860 = vld [vmem:[%s12 + $0x120] sm:$0xff]
    %v861 = vld [vmem:[%s12 + $0x128] sm:$0xff]
    %v862 = vld [vmem:[%s12 + $0x130] sm:$0xf]
    %v863 = vld [vmem:[%s12 + $0x134] sm:$0xff]
    %v864 = vld [vmem:[%s12 + $0x13c] sm:$0xff]
    %v865 = vld [vmem:[%s12 + $0x144] sm:$0xff]
    %v866 = vld [vmem:[%s12 + $0x14c] sm:$0xf]
    %v867 = vld [vmem:[%s12 + $0x150] sm:$0xff]
    %v868 = vld [vmem:[%s12 + $0x158] sm:$0xff]
    %v869 = vld [vmem:[%s12 + $0x160] sm:$0xff]
    %v870 = vld [vmem:[%s12 + $0x168] sm:$0xf]
    %v871 = vld [vmem:[%s12 + $0x16c] sm:$0xff]
    %v872 = vld [vmem:[%s12 + $0x174] sm:$0xff]
    %v873 = vld [vmem:[%s12 + $0x17c] sm:$0xff]
    %v874 = vld [vmem:[%s12 + $0x184] sm:$0xf]
    %v875 = vld [vmem:[%s12 + $0x188] sm:$0xff]
    %v876 = vld [vmem:[%s12 + $0x190] sm:$0xff]
    %v877 = vld [vmem:[%s12 + $0x198] sm:$0xff]
    %v878 = vld [vmem:[%s12 + $0x1a0] sm:$0xf]
    %v879 = vld [vmem:[%s12 + $0x1a4] sm:$0xff]
    %v880 = vld [vmem:[%s12 + $0x1ac] sm:$0xff]
    %v881 = vld [vmem:[%s12 + $0x1b4] sm:$0xff]
    %v882 = vld [vmem:[%s12 + $0x1bc] sm:$0xf]
    %v883 = vld [vmem:[%s13] sm:$0x7f]
    %v885 = vperm.slane %v883, 0
    %v886 = vperm.slane %v883, 1
    %v887 = vperm.slane %v883, 2
    %v888 = vperm.slane %v883, 3
    %v889 = vperm.slane %v883, 4
    %v890 = vperm.slane %v883, 5
    %v891 = vperm.slane %v883, 6
    %v963 = vunpack.c.l.b16 %v819
    %v964 = vunpack.c.h.b16 %v819
    %v965 = vunpack.c.l.b16 %v820
    %v966 = vunpack.c.h.b16 %v820
    %v967 = vunpack.c.l.b16 %v821
    %v968 = vunpack.c.h.b16 %v821
    %v969 = vunpack.c.l.b16 %v822
    %v970 = vunpack.c.l.b16 %v823
    %v971 = vunpack.c.h.b16 %v823
    %v972 = vunpack.c.l.b16 %v824
    %v973 = vunpack.c.h.b16 %v824
    %v974 = vunpack.c.l.b16 %v825
    %v975 = vunpack.c.h.b16 %v825
    %v976 = vunpack.c.l.b16 %v826
    %v977 = vunpack.c.l.b16 %v827
    %v978 = vunpack.c.h.b16 %v827
    %v979 = vunpack.c.l.b16 %v828
    %v980 = vunpack.c.h.b16 %v828
    %v981 = vunpack.c.l.b16 %v829
    %v982 = vunpack.c.h.b16 %v829
    %v983 = vunpack.c.l.b16 %v830
    %v984 = vunpack.c.l.b16 %v831
    %v985 = vunpack.c.h.b16 %v831
    %v986 = vunpack.c.l.b16 %v832
    %v987 = vunpack.c.h.b16 %v832
    %v988 = vunpack.c.l.b16 %v833
    %v989 = vunpack.c.h.b16 %v833
    %v990 = vunpack.c.l.b16 %v834
    %v991 = vunpack.c.l.b16 %v835
    %v992 = vunpack.c.h.b16 %v835
    %v993 = vunpack.c.l.b16 %v836
    %v994 = vunpack.c.h.b16 %v836
    %v995 = vunpack.c.l.b16 %v837
    %v996 = vunpack.c.h.b16 %v837
    %v997 = vunpack.c.l.b16 %v838
    %v998 = vunpack.c.l.b16 %v839
    %v999 = vunpack.c.h.b16 %v839
    %v1000 = vunpack.c.l.b16 %v840
    %v1001 = vunpack.c.h.b16 %v840
    %v1002 = vunpack.c.l.b16 %v841
    %v1003 = vunpack.c.h.b16 %v841
    %v1004 = vunpack.c.l.b16 %v842
    %v1005 = vunpack.c.l.b16 %v843
    %v1006 = vunpack.c.h.b16 %v843
    %v1007 = vunpack.c.l.b16 %v844
    %v1008 = vunpack.c.h.b16 %v844
    %v1009 = vunpack.c.l.b16 %v845
    %v1010 = vunpack.c.h.b16 %v845
    %v1011 = vunpack.c.l.b16 %v846
    %v1012 = vunpack.c.l.b16 %v847
    %v1013 = vunpack.c.h.b16 %v847
    %v1014 = vunpack.c.l.b16 %v848
    %v1015 = vunpack.c.h.b16 %v848
    %v1016 = vunpack.c.l.b16 %v849
    %v1017 = vunpack.c.h.b16 %v849
    %v1018 = vunpack.c.l.b16 %v850
    %v1019 = vunpack.c.l.b16 %v851
    %v1020 = vunpack.c.h.b16 %v851
    %v1021 = vunpack.c.l.b16 %v852
    %v1022 = vunpack.c.h.b16 %v852
    %v1023 = vunpack.c.l.b16 %v853
    %v1024 = vunpack.c.h.b16 %v853
    %v1025 = vunpack.c.l.b16 %v854
    %v1026 = vunpack.c.l.b16 %v855
    %v1027 = vunpack.c.h.b16 %v855
    %v1028 = vunpack.c.l.b16 %v856
    %v1029 = vunpack.c.h.b16 %v856
    %v1030 = vunpack.c.l.b16 %v857
    %v1031 = vunpack.c.h.b16 %v857
    %v1032 = vunpack.c.l.b16 %v858
    %v1033 = vunpack.c.l.b16 %v859
    %v1034 = vunpack.c.h.b16 %v859
    %v1035 = vunpack.c.l.b16 %v860
    %v1036 = vunpack.c.h.b16 %v860
    %v1037 = vunpack.c.l.b16 %v861
    %v1038 = vunpack.c.h.b16 %v861
    %v1039 = vunpack.c.l.b16 %v862
    %v1040 = vunpack.c.l.b16 %v863
    %v1041 = vunpack.c.h.b16 %v863
    %v1042 = vunpack.c.l.b16 %v864
    %v1043 = vunpack.c.h.b16 %v864
    %v1044 = vunpack.c.l.b16 %v865
    %v1045 = vunpack.c.h.b16 %v865
    %v1046 = vunpack.c.l.b16 %v866
    %v1047 = vunpack.c.l.b16 %v867
    %v1048 = vunpack.c.h.b16 %v867
    %v1049 = vunpack.c.l.b16 %v868
    %v1050 = vunpack.c.h.b16 %v868
    %v1051 = vunpack.c.l.b16 %v869
    %v1052 = vunpack.c.h.b16 %v869
    %v1053 = vunpack.c.l.b16 %v870
    %v1054 = vunpack.c.l.b16 %v871
    %v1055 = vunpack.c.h.b16 %v871
    %v1056 = vunpack.c.l.b16 %v872
    %v1057 = vunpack.c.h.b16 %v872
    %v1058 = vunpack.c.l.b16 %v873
    %v1059 = vunpack.c.h.b16 %v873
    %v1060 = vunpack.c.l.b16 %v874
    %v1061 = vunpack.c.l.b16 %v875
    %v1062 = vunpack.c.h.b16 %v875
    %v1063 = vunpack.c.l.b16 %v876
    %v1064 = vunpack.c.h.b16 %v876
    %v1065 = vunpack.c.l.b16 %v877
    %v1066 = vunpack.c.h.b16 %v877
    %v1067 = vunpack.c.l.b16 %v878
    %v1068 = vunpack.c.l.b16 %v879
    %v1069 = vunpack.c.h.b16 %v879
    %v1070 = vunpack.c.l.b16 %v880
    %v1071 = vunpack.c.h.b16 %v880
    %v1072 = vunpack.c.l.b16 %v881
    %v1073 = vunpack.c.h.b16 %v881
    %v1074 = vunpack.c.l.b16 %v882
    %v1075 = vpack.c.b16 %v970, %v963
    %v1076 = vpack.c.b16 %v971, %v964
    %v1077 = vpack.c.b16 %v972, %v965
    %v1078 = vpack.c.b16 %v973, %v966
    %v1079 = vpack.c.b16 %v974, %v967
    %v1080 = vpack.c.b16 %v975, %v968
    %v1081 = vpack.c.b16 %v976, %v969
    %v1082 = vpack.c.b16 %v984, %v977
    %v1083 = vpack.c.b16 %v985, %v978
    %v1084 = vpack.c.b16 %v986, %v979
    %v1085 = vpack.c.b16 %v987, %v980
    %v1086 = vpack.c.b16 %v988, %v981
    %v1087 = vpack.c.b16 %v989, %v982
    %v1088 = vpack.c.b16 %v990, %v983
    %v1089 = vpack.c.b16 %v998, %v991
    %v1090 = vpack.c.b16 %v999, %v992
    %v1091 = vpack.c.b16 %v1000, %v993
    %v1092 = vpack.c.b16 %v1001, %v994
    %v1093 = vpack.c.b16 %v1002, %v995
    %v1094 = vpack.c.b16 %v1003, %v996
    %v1095 = vpack.c.b16 %v1004, %v997
    %v1096 = vpack.c.b16 %v1012, %v1005
    %v1097 = vpack.c.b16 %v1013, %v1006
    %v1098 = vpack.c.b16 %v1014, %v1007
    %v1099 = vpack.c.b16 %v1015, %v1008
    %v1100 = vpack.c.b16 %v1016, %v1009
    %v1101 = vpack.c.b16 %v1017, %v1010
    %v1102 = vpack.c.b16 %v1018, %v1011
    %v1103 = vpack.c.b16 %v1026, %v1019
    %v1104 = vpack.c.b16 %v1027, %v1020
    %v1105 = vpack.c.b16 %v1028, %v1021
    %v1106 = vpack.c.b16 %v1029, %v1022
    %v1107 = vpack.c.b16 %v1030, %v1023
    %v1108 = vpack.c.b16 %v1031, %v1024
    %v1109 = vpack.c.b16 %v1032, %v1025
    %v1110 = vpack.c.b16 %v1040, %v1033
    %v1111 = vpack.c.b16 %v1041, %v1034
    %v1112 = vpack.c.b16 %v1042, %v1035
    %v1113 = vpack.c.b16 %v1043, %v1036
    %v1114 = vpack.c.b16 %v1044, %v1037
    %v1115 = vpack.c.b16 %v1045, %v1038
    %v1116 = vpack.c.b16 %v1046, %v1039
    %v1117 = vpack.c.b16 %v1054, %v1047
    %v1118 = vpack.c.b16 %v1055, %v1048
    %v1119 = vpack.c.b16 %v1056, %v1049
    %v1120 = vpack.c.b16 %v1057, %v1050
    %v1121 = vpack.c.b16 %v1058, %v1051
    %v1122 = vpack.c.b16 %v1059, %v1052
    %v1123 = vpack.c.b16 %v1060, %v1053
    %v1124 = vpack.c.b16 %v1068, %v1061
    %v1125 = vpack.c.b16 %v1069, %v1062
    %v1126 = vpack.c.b16 %v1070, %v1063
    %v1127 = vpack.c.b16 %v1071, %v1064
    %v1128 = vpack.c.b16 %v1072, %v1065
    %v1129 = vpack.c.b16 %v1073, %v1066
    %v1130 = vpack.c.b16 %v1074, %v1067
    %1187 = vmatpush.bf16.msra.mxu0 %v1124
    %1188 = vmatpush.bf16.msra.mxu0 %v1117
    %1189 = vmatpush.bf16.msra.mxu0 %v1110
    %1190 = vmatpush.bf16.msra.mxu0 %v1103
    %1191 = vmatpush.bf16.msra.mxu0 %v1096
    %1192 = vmatpush.bf16.msra.mxu0 %v1089
    %1193 = vmatpush.bf16.msra.mxu0 %v1082
    %1194 = vmatpush.bf16.msra.mxu0 %v1075
    %1195 = vmatmul.bf16.gmra.mxu0 %v818
    %v1196 = vpop.f32.mrf.mxu0
    %v1197 = vadd.f32 %v885, %v1196
    %v1198 = vpop.f32.mrf.mxu0
    %1199 = vdwg.mxu0
    %1200 = vmatpush.bf16.msra.mxu0 %v1125
    %1201 = vmatpush.bf16.msra.mxu0 %v1118
    %1202 = vmatpush.bf16.msra.mxu0 %v1111
    %1203 = vmatpush.bf16.msra.mxu0 %v1104
    %1204 = vmatpush.bf16.msra.mxu0 %v1097
    %1205 = vmatpush.bf16.msra.mxu0 %v1090
    %1206 = vmatpush.bf16.msra.mxu0 %v1083
    %1207 = vmatpush.bf16.msra.mxu0 %v1076
    %1208 = vmatmul.bf16.gmra.mxu0 %v818
    %v1209 = vpop.f32.mrf.mxu0
    %v1210 = vadd.f32 %v886, %v1209
    %v1211 = vpop.f32.mrf.mxu0
    %1212 = vdwg.mxu0
    %1213 = vmatpush.bf16.msra.mxu0 %v1126
    %1214 = vmatpush.bf16.msra.mxu0 %v1119
    %1215 = vmatpush.bf16.msra.mxu0 %v1112
    %1216 = vmatpush.bf16.msra.mxu0 %v1105
    %1217 = vmatpush.bf16.msra.mxu0 %v1098
    %1218 = vmatpush.bf16.msra.mxu0 %v1091
    %1219 = vmatpush.bf16.msra.mxu0 %v1084
    %1220 = vmatpush.bf16.msra.mxu0 %v1077
    %1221 = vmatmul.bf16.gmra.mxu0 %v818
    %v1222 = vpop.f32.mrf.mxu0
    %v1223 = vadd.f32 %v887, %v1222
    %v1224 = vpop.f32.mrf.mxu0
    %1225 = vdwg.mxu0
    %1226 = vmatpush.bf16.msra.mxu0 %v1127
    %1227 = vmatpush.bf16.msra.mxu0 %v1120
    %1228 = vmatpush.bf16.msra.mxu0 %v1113
    %1229 = vmatpush.bf16.msra.mxu0 %v1106
    %1230 = vmatpush.bf16.msra.mxu0 %v1099
    %1231 = vmatpush.bf16.msra.mxu0 %v1092
    %1232 = vmatpush.bf16.msra.mxu0 %v1085
    %1233 = vmatpush.bf16.msra.mxu0 %v1078
    %1234 = vmatmul.bf16.gmra.mxu0 %v818
    %v1235 = vpop.f32.mrf.mxu0
    %v1236 = vadd.f32 %v888, %v1235
    %v1237 = vpop.f32.mrf.mxu0
    %1238 = vdwg.mxu0
    %1239 = vmatpush.bf16.msra.mxu0 %v1128
    %1240 = vmatpush.bf16.msra.mxu0 %v1121
    %1241 = vmatpush.bf16.msra.mxu0 %v1114
    %1242 = vmatpush.bf16.msra.mxu0 %v1107
    %1243 = vmatpush.bf16.msra.mxu0 %v1100
    %1244 = vmatpush.bf16.msra.mxu0 %v1093
    %1245 = vmatpush.bf16.msra.mxu0 %v1086
    %1246 = vmatpush.bf16.msra.mxu0 %v1079
    %1247 = vmatmul.bf16.gmra.mxu0 %v818
    %v1248 = vpop.f32.mrf.mxu0
    %v1249 = vadd.f32 %v889, %v1248
    %v1250 = vpop.f32.mrf.mxu0
    %1251 = vdwg.mxu0
    %1252 = vmatpush.bf16.msra.mxu0 %v1129
    %1253 = vmatpush.bf16.msra.mxu0 %v1122
    %1254 = vmatpush.bf16.msra.mxu0 %v1115
    %1255 = vmatpush.bf16.msra.mxu0 %v1108
    %1256 = vmatpush.bf16.msra.mxu0 %v1101
    %1257 = vmatpush.bf16.msra.mxu0 %v1094
    %1258 = vmatpush.bf16.msra.mxu0 %v1087
    %1259 = vmatpush.bf16.msra.mxu0 %v1080
    %1260 = vmatmul.bf16.gmra.mxu0 %v818
    %v1261 = vpop.f32.mrf.mxu0
    %v1262 = vadd.f32 %v890, %v1261
    %v1263 = vpop.f32.mrf.mxu0
    %1264 = vdwg.mxu0
    %1265 = vmatpush.bf16.msra.mxu0 %v1130
    %1266 = vmatpush.bf16.msra.mxu0 %v1123
    %1267 = vmatpush.bf16.msra.mxu0 %v1116
    %1268 = vmatpush.bf16.msra.mxu0 %v1109
    %1269 = vmatpush.bf16.msra.mxu0 %v1102
    %1270 = vmatpush.bf16.msra.mxu0 %v1095
    %1271 = vmatpush.bf16.msra.mxu0 %v1088
    %1272 = vmatpush.bf16.msra.mxu0 %v1081
    %1273 = vmatmul.bf16.gmra.mxu0 %v818
    %v1274 = vpop.f32.mrf.mxu0
    %v1275 = vadd.f32 %v891, %v1274
    %v1276 = vpop.f32.mrf.mxu0
    %1277 = vdwg.mxu0
    %v1278 = vxor.u32 %v1197, 2147483648
    %v1279 = vxor.u32 %v1210, 2147483648
    %v1280 = vxor.u32 %v1223, 2147483648
    %v1281 = vxor.u32 %v1236, 2147483648
    %v1282 = vxor.u32 %v1249, 2147483648
    %v1283 = vxor.u32 %v1262, 2147483648
    %v1284 = vxor.u32 %v1275, 2147483648
    %v1285 = vmul.f32 %v1278, 1.442695
    %v1286 = vpow.pop %v1285
    %v1287 = vmul.f32 %v1279, 1.442695
    %v1288 = vpow.pop %v1287
    %v1289 = vmul.f32 %v1280, 1.442695
    %v1290 = vpow.pop %v1289
    %v1291 = vmul.f32 %v1281, 1.442695
    %v1292 = vpow.pop %v1291
    %v1293 = vmul.f32 %v1282, 1.442695
    %v1294 = vpow.pop %v1293
    %v1295 = vmul.f32 %v1283, 1.442695
    %v1296 = vpow.pop %v1295
    %v1297 = vmul.f32 %v1284, 1.442695
    %v1298 = vpow.pop %v1297
    %v1299 = vadd.f32 %v1286, 1.0
    %v1300 = vadd.f32 %v1288, 1.0
    %v1301 = vadd.f32 %v1290, 1.0
    %v1302 = vadd.f32 %v1292, 1.0
    %v1303 = vadd.f32 %v1294, 1.0
    %v1304 = vadd.f32 %v1296, 1.0
    %v1305 = vadd.f32 %v1298, 1.0
    %v1306 = vrcp.pop %v1299
    %v1307 = vmul.f32 %v1299, %v1306
    %v1308 = vsub.f32 1.0, %v1307
    %v1309 = vmul.f32 %v1306, %v1308
    %v1310 = vadd.f32 %v1306, %v1309
    %vm1311 = vweird.f32 %v1299
    %vm1312 = vweird.f32 %v1306
    %vm1313 = vmor %vm1311, %vm1312
    %v1314 = vsel %vm1313, %v1306, %v1310
    %v1315 = vand.u32 2147483647, %v1299
    %vm1316 = vcmp.eq.f32.partialorder %v1315, 8.507059e+37
    %v1317 = vand.u32 %v1299, 2147483648
    %v1318 = vor.u32 1.1754944e-38, %v1317
    %v1319 = vsel %vm1316, %v1318, %v1314
    %v1320 = vmul.f32 1.0, %v1319
    %v1321 = vrcp.pop %v1300
    %v1322 = vmul.f32 %v1300, %v1321
    %v1323 = vsub.f32 1.0, %v1322
    %v1324 = vmul.f32 %v1321, %v1323
    %v1325 = vadd.f32 %v1321, %v1324
    %vm1326 = vweird.f32 %v1300
    %vm1327 = vweird.f32 %v1321
    %vm1328 = vmor %vm1326, %vm1327
    %v1329 = vsel %vm1328, %v1321, %v1325
    %v1330 = vand.u32 2147483647, %v1300
    %vm1331 = vcmp.eq.f32.partialorder %v1330, 8.507059e+37
    %v1332 = vand.u32 %v1300, 2147483648
    %v1333 = vor.u32 1.1754944e-38, %v1332
    %v1334 = vsel %vm1331, %v1333, %v1329
    %v1335 = vmul.f32 1.0, %v1334
    %v1336 = vrcp.pop %v1301
    %v1337 = vmul.f32 %v1301, %v1336
    %v1338 = vsub.f32 1.0, %v1337
    %v1339 = vmul.f32 %v1336, %v1338
    %v1340 = vadd.f32 %v1336, %v1339
    %vm1341 = vweird.f32 %v1301
    %vm1342 = vweird.f32 %v1336
    %vm1343 = vmor %vm1341, %vm1342
    %v1344 = vsel %vm1343, %v1336, %v1340
    %v1345 = vand.u32 2147483647, %v1301
    %vm1346 = vcmp.eq.f32.partialorder %v1345, 8.507059e+37
    %v1347 = vand.u32 %v1301, 2147483648
    %v1348 = vor.u32 1.1754944e-38, %v1347
    %v1349 = vsel %vm1346, %v1348, %v1344
    %v1350 = vmul.f32 1.0, %v1349
    %v1351 = vrcp.pop %v1302
    %v1352 = vmul.f32 %v1302, %v1351
    %v1353 = vsub.f32 1.0, %v1352
    %v1354 = vmul.f32 %v1351, %v1353
    %v1355 = vadd.f32 %v1351, %v1354
    %vm1356 = vweird.f32 %v1302
    %vm1357 = vweird.f32 %v1351
    %vm1358 = vmor %vm1356, %vm1357
    %v1359 = vsel %vm1358, %v1351, %v1355
    %v1360 = vand.u32 2147483647, %v1302
    %vm1361 = vcmp.eq.f32.partialorder %v1360, 8.507059e+37
    %v1362 = vand.u32 %v1302, 2147483648
    %v1363 = vor.u32 1.1754944e-38, %v1362
    %v1364 = vsel %vm1361, %v1363, %v1359
    %v1365 = vmul.f32 1.0, %v1364
    %v1366 = vrcp.pop %v1303
    %v1367 = vmul.f32 %v1303, %v1366
    %v1368 = vsub.f32 1.0, %v1367
    %v1369 = vmul.f32 %v1366, %v1368
    %v1370 = vadd.f32 %v1366, %v1369
    %vm1371 = vweird.f32 %v1303
    %vm1372 = vweird.f32 %v1366
    %vm1373 = vmor %vm1371, %vm1372
    %v1374 = vsel %vm1373, %v1366, %v1370
    %v1375 = vand.u32 2147483647, %v1303
    %vm1376 = vcmp.eq.f32.partialorder %v1375, 8.507059e+37
    %v1377 = vand.u32 %v1303, 2147483648
    %v1378 = vor.u32 1.1754944e-38, %v1377
    %v1379 = vsel %vm1376, %v1378, %v1374
    %v1380 = vmul.f32 1.0, %v1379
    %v1381 = vrcp.pop %v1304
    %v1382 = vmul.f32 %v1304, %v1381
    %v1383 = vsub.f32 1.0, %v1382
    %v1384 = vmul.f32 %v1381, %v1383
    %v1385 = vadd.f32 %v1381, %v1384
    %vm1386 = vweird.f32 %v1304
    %vm1387 = vweird.f32 %v1381
    %vm1388 = vmor %vm1386, %vm1387
    %v1389 = vsel %vm1388, %v1381, %v1385
    %v1390 = vand.u32 2147483647, %v1304
    %vm1391 = vcmp.eq.f32.partialorder %v1390, 8.507059e+37
    %v1392 = vand.u32 %v1304, 2147483648
    %v1393 = vor.u32 1.1754944e-38, %v1392
    %v1394 = vsel %vm1391, %v1393, %v1389
    %v1395 = vmul.f32 1.0, %v1394
    %v1396 = vrcp.pop %v1305
    %v1397 = vmul.f32 %v1305, %v1396
    %v1398 = vsub.f32 1.0, %v1397
    %v1399 = vmul.f32 %v1396, %v1398
    %v1400 = vadd.f32 %v1396, %v1399
    %vm1401 = vweird.f32 %v1305
    %vm1402 = vweird.f32 %v1396
    %vm1403 = vmor %vm1401, %vm1402
    %v1404 = vsel %vm1403, %v1396, %v1400
    %v1405 = vand.u32 2147483647, %v1305
    %vm1406 = vcmp.eq.f32.partialorder %v1405, 8.507059e+37
    %v1407 = vand.u32 %v1305, 2147483648
    %v1408 = vor.u32 1.1754944e-38, %v1407
    %v1409 = vsel %vm1406, %v1408, %v1404
    %v1410 = vmul.f32 1.0, %v1409
    %1411 = vst [vmem:[#allocation2] sm:$0xff] %v1320
    %1412 = vst [vmem:[#allocation2 + $0x8] sm:$0xff] %v1335
    %1413 = vst [vmem:[#allocation2 + $0x10] sm:$0xff] %v1350
    %1414 = vst [vmem:[#allocation2 + $0x18] sm:$0xff] %v1365
    %1415 = vst [vmem:[#allocation2 + $0x20] sm:$0xff] %v1380
    %1416 = vst [vmem:[#allocation2 + $0x28] sm:$0xff] %v1395
    %1417 = vst.msk [vmem:[#allocation2 + $0x30] sm:$0xff] %vm464, %v1410
    %1418 = vst.msk [vmem:[#allocation4] sm:$0xff] %vm732, %v704
    %1420 = vrot.lane.b32.xlu0 %v704, 118
    %v1421 = vpop.permute.xlu0 %1420
    %1423 = vst.msk [vmem:[#allocation6] sm:$0xff] %vm732, %v1421
    // Predicated region
    $region58: #{tpu_custom_call.1} parent=1 // pred_check
      _
    $region59: #{tpu_custom_call.1} parent=1 // pred_check_branch
      %1425 = sbr.rel (0) target = $region61
    $region60: #{tpu_custom_call.1} parent=1 // pred_region
      %1427 = vsyncadd [#allocation3], 0
      %s1429 = sshll.u32 [#allocation2], 4
      %s1430 = int_to_ptr.vmem [resolvable:$true] %s1429
      %s1431 = sshll.u32 %s14, 4
      %s1432 = int_to_ptr.hbm [resolvable:$true] %s1431
      %1434 = dma.vmem_to_hbm [thread:$0]  %s1430, 896, %s1432, [#allocation3]
    $region61: #{tpu_custom_call.1} parent=1 // pred_fallthru
      _
    // Predicated region
    $region62: #{tpu_custom_call.1} parent=1 // pred_check
      _
    $region63: #{tpu_custom_call.1} parent=1 // pred_check_branch
      %1436 = sbr.rel (0) target = $region65
    $region64: #{tpu_custom_call.1} parent=1 // pred_region
      %1438 = vsyncadd [#allocation5], 0
      %s1440 = sshll.u32 [#allocation4], 4
      %s1441 = int_to_ptr.vmem [resolvable:$true] %s1440
      %s1442 = sshll.u32 %s15, 4
      %s1443 = int_to_ptr.hbm [resolvable:$true] %s1442
      %1445 = dma.vmem_to_hbm [thread:$0]  %s1441, 128, %s1443, [#allocation5]
    $region65: #{tpu_custom_call.1} parent=1 // pred_fallthru
      _
    // Predicated region
    $region66: #{tpu_custom_call.1} parent=1 // pred_check
      _
    $region67: #{tpu_custom_call.1} parent=1 // pred_check_branch
      %1447 = sbr.rel (0) target = $region69
    $region68: #{tpu_custom_call.1} parent=1 // pred_region
      %1449 = vsyncadd [#allocation5], 0
      %s1451 = sshll.u32 [#allocation6], 4
      %s1452 = int_to_ptr.vmem [resolvable:$true] %s1451
      %s1453 = sshll.u32 %s16, 4
      %s1454 = int_to_ptr.hbm [resolvable:$true] %s1453
      %1456 = dma.vmem_to_hbm [thread:$0]  %s1452, 128, %s1454, [#allocation5]
    $region69: #{tpu_custom_call.1} parent=1 // pred_fallthru
      _
    // Predicated region
    $region70: #{tpu_custom_call.1} parent=1 // pred_check
      _
    $region71: #{tpu_custom_call.1} parent=1 // pred_check_branch
      %1458 = sbr.rel (0) target = $region73
    $region72: #{tpu_custom_call.1} parent=1 // pred_region
      %1460 = dma.done [#allocation3], 896
    $region73: #{tpu_custom_call.1} parent=1 // pred_fallthru
      _
    // Predicated region
    $region74: #{tpu_custom_call.1} parent=1 // pred_check
      _
    $region75: #{tpu_custom_call.1} parent=1 // pred_check_branch
      %1462 = sbr.rel (0) target = $region77
    $region76: #{tpu_custom_call.1} parent=1 // pred_region
      %1464 = dma.done [#allocation5], 128
    $region77: #{tpu_custom_call.1} parent=1 // pred_fallthru
      _
    // Predicated region
    $region78: #{tpu_custom_call.1} parent=1 // pred_check
      _
    $region79: #{tpu_custom_call.1} parent=1 // pred_check_branch
      %1466 = sbr.rel (0) target = $region81
    $region80: #{tpu_custom_call.1} parent=1 // pred_region
      %1468 = dma.done [#allocation5], 128
    $region81: #{tpu_custom_call.1} parent=1 // pred_fallthru
      _
    %1469 = vsyncpa [#allocation3], 1
    %1470 = vsyncpa [#allocation5], 1

</llo_original>
